<compile_context>
chip_gen: v5e
topology: v5e:2x2
jax: 0.10.0
libtpu: 0.0.40
codegen_flags: <defaults>
</compile_context>

<pallas_src>
import functools

import jax
import jax.numpy as jnp
from jax import lax
from jax.experimental import pallas as pl
from jax.experimental.pallas import tpu as pltpu

_MB = 1024 * 1024


def _ln_lastdim(x, g, b, eps):
    """PyTorch-style LayerNorm over the last dim (biased variance)."""
    mu = jnp.mean(x, axis=-1, keepdims=True)
    xc = x - mu
    var = jnp.mean(xc * xc, axis=-1, keepdims=True)
    return xc * lax.rsqrt(var + eps) * g + b


def dbow_kernel(*refs, k, eps, norm_residual, has_mask, compute_dtype):
    if has_mask:
        (x_ref, m_ref, g0_ref, b0_ref, gi_ref, bi_ref,
         w1_ref, b1_ref, w2_ref, b2_ref, o_ref) = refs
    else:
        (x_ref, g0_ref, b0_ref, gi_ref, bi_ref,
         w1_ref, b1_ref, w2_ref, b2_ref, o_ref) = refs
        m_ref = None

    TB, S, D = x_ref.shape
    MM = TB * S
    cd = compute_dtype

    x3 = x_ref[...].astype(jnp.float32)
    if m_ref is not None:
        # fused masked_fill_(mask, 0.) -- saves a separate HBM read+write of x.
        x3 = x3 * (1.0 - m_ref[...].astype(jnp.float32))

    # ---- outer LayerNorm(D) ----
    _x3 = _ln_lastdim(x3, g0_ref[...], b0_ref[...], eps)
    total3 = jnp.sum(_x3, axis=1, keepdims=True)            # per-sequence feature totals

    # ---- flatten (TB, S, D) -> (TB*S, D): lane-dense 2-D working set, big MXU M ----
    x2 = x3.reshape(MM, D)
    _x = _x3.reshape(MM, D)
    total = jnp.broadcast_to(total3, (TB, S, D)).reshape(MM, D)
    pos = lax.broadcasted_iota(jnp.int32, (TB, S, 1), 1).reshape(MM, 1)  # index in own seq

    # ---- segmented inclusive prefix sum along the sequence (Hillis-Steele, XLU rolls) ----
    cs = _x
    d = 1
    while d < S:
        cs = cs + jnp.where(pos >= d, pltpu.roll(cs, d, axis=0), 0.0)
        d *= 2

    def shift_down(a, m):
        # r[i] = a[i-m] within its own sequence, 0 over the left zero padding.
        if m >= S:
            return jnp.zeros_like(a)
        return jnp.where(pos >= m, pltpu.roll(a, m, axis=0), 0.0)

    def shift_up(a, m, fill):
        # r[i] = a[i+m] within its own sequence, `fill` past the end.
        if m >= S:
            return fill
        return jnp.where(pos < S - m, pltpu.roll(a, (MM - m) % MM, axis=0), fill)

    cs_mk = shift_down(cs, k)            # cs[i-k]   (== torch lcumsum.narrow(.,0,S))
    cs_p1 = shift_up(cs, 1, total)       # cs[i+1]  -> total past the end
    cs_pk = shift_up(cs, k, total)       # cs[i+k]  -> total past the end
    rsum = total - cs_p1                 # torch rcumsum

    # Trimmed epilogue: lbow needs only ONE extra roll (was two).
    lbow = shift_down(cs - cs_mk, 1)     # sum_{p in [i-k, i-1]} _x[p]   (zero padded)
    rbow = cs_pk - cs                    # sum_{p in [i+1, i+k]} _x[p]   (zero padded)
    lctx = cs_mk - lbow                  # lcumsum[i] - lbow[i]
    rctx = rsum - rbow                   # rcumsum[i] - rbow[i]

    # ---- joint LayerNorm over the stacked (4, D) features, stack never materialized.
    # lctx+lbow == cs_mk and rctx+rbow == rsum  ->  cheap mean (saves two (MM,D) adds).
    inv4d = 1.0 / (4.0 * D)
    mu = jnp.sum(cs_mk + rsum, axis=-1, keepdims=True) * inv4d
    c0, c1, c2, c3 = lctx - mu, lbow - mu, rbow - mu, rctx - mu
    var = jnp.sum(c0 * c0 + c1 * c1 + c2 * c2 + c3 * c3, axis=-1, keepdims=True) * inv4d
    rstd = lax.rsqrt(var + eps)
    gi, bi = gi_ref[...], bi_ref[...]                       # (4, D) affine params

    # ---- fused exnet ∘ channel-shuffle ∘ GroupLinear(5D->H), MXU K-packed:
    # ONE (MM, 5D) x (5D, H) dot (full 256-wide K on v6e/v7x).  Weights are already
    # in compute_dtype (host-cast); only the activations are cast here.
    f5 = jnp.concatenate(
        [(c0 * rstd * gi[0:1] + bi[0:1]).astype(cd),        # lctx (normalized)
         (c1 * rstd * gi[1:2] + bi[1:2]).astype(cd),        # lbow
         (c2 * rstd * gi[2:3] + bi[2:3]).astype(cd),        # rbow
         (c3 * rstd * gi[3:4] + bi[3:4]).astype(cd),        # rctx
         _x.astype(cd)], axis=-1)                           # 5th exnet group = _x

    acc = jnp.dot(f5, w1_ref[...], preferred_element_type=jnp.float32)
    z = jnp.maximum(acc + b1_ref[...], 0.0)                 # ReLU (custom_act=False)
    out = jnp.dot(z.astype(cd), w2_ref[...],
                  preferred_element_type=jnp.float32) + b2_ref[...]

    res = _x if norm_residual else x2
    o_ref[...] = (out + res).reshape(TB, S, D).astype(o_ref.dtype)


# ---------------------------------------------------------------------------
# Generation-aware sizing helpers
# ---------------------------------------------------------------------------
def _tpu_vmem_capacity_bytes():
    try:
        cap = getattr(pltpu.get_tpu_info(), "vmem_capacity_bytes", None)
        if cap:
            return int(cap)
    except Exception:
        pass
    return None


def _default_vmem_limit_bytes():
    cap = _tpu_vmem_capacity_bytes()
    if cap is None:
        return 48 * _MB           # safe ceiling on every generation (v7x: 64 MiB / TC)
    # Leave ~16 MiB headroom for Mosaic scratch + double-buffered I/O blocks:
    # 112 MiB on 128-MiB parts (v5e/v6e), 48 MiB on 64-MiB parts (v7x).
    return int(min(cap - 16 * _MB, 112 * _MB))


def _num_parallel_tensorcores():
    """TensorCores a single 'parallel' grid axis is sharded over."""
    try:
        kind = jax.devices()[0].device_kind.lower()
    except Exception:
        return 1
    if ("v4" in kind) or ("v5p" in kind) or ("7" in kind):   # megacore / v7x: 2 TCs
        return 2
    return 1


def _pick_block_b(B, S, D, H, *, vmem_limit_bytes, num_cores, max_rows=2048):
    """Largest batch tile dividing B such that (a) the per-step f32 working set fits
    comfortably under the VMEM limit, (b) MM = TB*S <= max_rows so the (MM,H) MLP
    intermediates stay bounded, and (c) on multi-TC parts the step count is a multiple
    of the core count (balanced 'parallel' axis).  Single-TC parts are never forced
    to split: the grid is a sequential loop there, so one big block is best."""
    per_seq = (26 * D + 3 * H) * S * 4                      # conservative f32 bytes/seq
    budget = max(int(vmem_limit_bytes * 0.45), 4 * _MB)
    tb = max(1, min(B, budget // max(per_seq, 1), max(1, max_rows // S)))
    while B % tb:
        tb -= 1
    if num_cores > 1:
        while tb > 1 and (B // tb) % num_cores:
            tb -= 1
            while B % tb:
                tb -= 1
    return int(tb)


# ---------------------------------------------------------------------------
# Host-side parameter folding
# ---------------------------------------------------------------------------
def fold_params(g0, b0, gin, bin_, We, Wg1, bg1, W2, b2):
    """Fold exnet (5-group GroupLinear, bias=False) ∘ channel-shuffle ∘ GroupLinear(5D->H)
    into ONE dense (5D, H) matrix -- all three are linear maps with no nonlinearity in
    between, so the composition is exact (done once on the host)."""
    ng5, D, _ = We.shape                         # (5, D, D)
    ngroup, GS, HG = Wg1.shape                   # (4, 5D/4, H/4)
    H = ngroup * HG
    M1 = jnp.zeros((ng5 * D, H), Wg1.dtype)      # block-diagonal 4-group linear
    for g in range(ngroup):
        M1 = M1.at[g * GS:(g + 1) * GS, g * HG:(g + 1) * HG].set(Wg1[g])
    # channel shuffle: flattened-shuffled channel (e*5 + g) == exnet output channel (g, e)
    w1 = jnp.concatenate([We[g] @ M1[g::ng5, :] for g in range(ng5)], axis=0)   # (5D, H)
    return {"ln0_g": g0, "ln0_b": b0, "ln1_g": gin, "ln1_b": bin_,
            "w1": w1, "b1": bg1.reshape(H), "w2": W2, "b2": b2}


# ---------------------------------------------------------------------------
# Wrapper
# ---------------------------------------------------------------------------
def dbow_forward(x, params, mask=None, *, num_head=5, eps=1e-6, norm_residual=False,
                 block_b=None, compute_dtype=jnp.float32, vmem_limit_bytes=None):
    """Fused DBOW forward.  x: (B, S, D) float32, params from fold_params().
    compute_dtype=jnp.bfloat16 runs both MXU stages in bf16 with f32 accumulation --
    recommended on every TPU generation (v5e/v6e/v7x MXUs are bf16-native); all
    LayerNorm / prefix-sum math stays f32."""
    B, S, D = x.shape
    H = params["w2"].shape[0]
    if S % 8 != 0:
        # TODO(synk): pad the sequence axis to a multiple of 8 for arbitrary S.
        raise ValueError("sequence length must be a multiple of 8 (sublane tiling)")

    if vmem_limit_bytes is None:
        vmem_limit_bytes = _default_vmem_limit_bytes()
    num_cores = _num_parallel_tensorcores()
    if block_b is None:
        block_b = _pick_block_b(B, S, D, H, vmem_limit_bytes=vmem_limit_bytes,
                                num_cores=num_cores)
    grid = (B // block_b,)

    bmap = lambda b: (b, 0, 0)
    cmap = lambda b: (0, 0)

    in_specs = [pl.BlockSpec((block_b, S, D), bmap)]
    args = [x]
    if mask is not None:
        in_specs.append(pl.BlockSpec((block_b, S, 1), bmap))
        args.append(mask.reshape(B, S, 1).astype(x.dtype))

    # Grid-invariant parameters as 2-D (sublane, lane) blocks; matmul weights are cast
    # to compute_dtype HOST-SIDE (no per-step converts, half the DMA/VMEM in bf16).
    w1 = params["w1"].astype(compute_dtype)
    w2 = params["w2"].astype(compute_dtype)
    in_specs += [
        pl.BlockSpec((1, D), cmap),        # outer LN gamma
        pl.BlockSpec((1, D), cmap),        # outer LN beta
        pl.BlockSpec((4, D), cmap),        # inner LN((4,D)) gamma
        pl.BlockSpec((4, D), cmap),        # inner LN((4,D)) beta
        pl.BlockSpec((5 * D, H), cmap),    # folded exnet∘shuffle∘GroupLinear1 weight
        pl.BlockSpec((1, H), cmap),        # GroupLinear1 bias
        pl.BlockSpec((H, D), cmap),        # final Linear weight (in, out)
        pl.BlockSpec((1, D), cmap),        # final Linear bias
    ]
    args += [
        params["ln0_g"].reshape(1, D), params["ln0_b"].reshape(1, D),
        params["ln1_g"].reshape(4, D), params["ln1_b"].reshape(4, D),
        w1, params["b1"].reshape(1, H),
        w2, params["b2"].reshape(1, D),
    ]
    # TODO(synk): the 8 parameter blocks are grid-invariant; single-buffering them
    # would reclaim ~1 MiB VMEM but is left at the (safe) default pipelining here.

    kernel = functools.partial(
        dbow_kernel, k=num_head, eps=eps, norm_residual=norm_residual,
        has_mask=mask is not None, compute_dtype=compute_dtype)

    return pl.pallas_call(
        kernel,
        out_shape=jax.ShapeDtypeStruct((B, S, D), x.dtype),
        grid=grid,
        in_specs=in_specs,
        out_specs=pl.BlockSpec((block_b, S, D), bmap),
        compiler_params=pltpu.CompilerParams(
            dimension_semantics=("parallel",),
            vmem_limit_bytes=int(vmem_limit_bytes)),
    )(*args)


# ---------------------------------------------------------------------------
# Pure-JAX reference (transliteration of the PyTorch forward, un-folded params)
# ---------------------------------------------------------------------------
def dbow_reference(x, g0, b0, gin, bin_, We, Wg1, bg1, W2, b2, *,
                   num_head=5, eps=1e-6, norm_residual=False, mask=None):
    if mask is not None:
        x = jnp.where(mask, 0.0, x)
    B, S, D = x.shape
    k = num_head
    ngroup, GS, HG = Wg1.shape
    _x = _ln_lastdim(x, g0, b0, eps)
    pad = jnp.zeros((B, k, D), x.dtype)
    out = jnp.concatenate([pad, _x, pad], axis=1)                 # (B, S+2k, D)
    bow = sum(out[:, j:j + S + k + 1, :] for j in range(k))       # AvgPool1d(k,1)*k
    lbow, rbow = bow[:, :S], bow[:, k + 1:k + 1 + S]
    lcs = jnp.cumsum(out, axis=1)
    total = lcs[:, -1:, :]
    rcs = total - lcs[:, k + 1:k + 1 + S]
    lctx = lcs[:, :S] - lbow
    rctx = rcs - rbow
    stacked = jnp.stack([lctx, lbow, rbow, rctx], axis=-2)        # (B, S, 4, D)
    mu = jnp.mean(stacked, axis=(-2, -1), keepdims=True)
    var = jnp.mean((stacked - mu) ** 2, axis=(-2, -1), keepdims=True)
    normed = (stacked - mu) * lax.rsqrt(var + eps) * gin + bin_
    feats5 = jnp.concatenate([normed, _x[:, :, None, :]], axis=-2)   # (B, S, 5, D)
    ex = jnp.einsum("bsgd,gde->bsge", feats5, We)                    # exnet, bias=False
    exf = jnp.swapaxes(ex, -1, -2).reshape(B, S, 5 * D)              # channel shuffle
    h = jnp.einsum("bsgi,gio->bsgo", exf.reshape(B, S, ngroup, GS), Wg1) + bg1[None, None]
    z = jnp.maximum(h.reshape(B, S, ngroup * HG), 0.0)
    o = z @ W2 + b2
    return o + (_x if norm_residual else x)


if __name__ == "__main__":
    B, S, D, H = 4, 16, 128, 256     # small, lane-dense demo shapes (D, H multiples of 128)
    num_head = 5                      # DBOW default -> window size k = 5
    ngroup = 4
    eps = 1e-6

    ks = jax.random.split(jax.random.PRNGKey(0), 11)
    x = jax.random.normal(ks[0], (B, S, D), jnp.float32)
    mask = jax.random.uniform(ks[1], (B, S, 1)) < 0.2

    # raw (PyTorch-layout) parameters
    g0 = 1.0 + 0.1 * jax.random.normal(ks[2], (D,), jnp.float32)
    b0 = 0.1 * jax.random.normal(ks[3], (D,), jnp.float32)
    gin = 1.0 + 0.1 * jax.random.normal(ks[4], (4, D), jnp.float32)
    bin_ = 0.1 * jax.random.normal(ks[5], (4, D), jnp.float32)
    We = 0.1 * jax.random.normal(ks[6], (5, D, D), jnp.float32)          # exnet (no bias)
    GS, HG = (5 * D) // ngroup, H // ngroup
    Wg1 = 0.1 * jax.random.normal(ks[7], (ngroup, GS, HG), jnp.float32)  # GroupLinear(5D->H)
    bg1 = 0.1 * jax.random.normal(ks[8], (ngroup, HG), jnp.float32)
    W2 = 0.1 * jax.random.normal(ks[9], (H, D), jnp.float32)             # Linear(H->D), (in,out)
    b2 = 0.1 * jax.random.normal(ks[10], (D,), jnp.float32)

    params = fold_params(g0, b0, gin, bin_, We, Wg1, bg1, W2, b2)
    ref = dbow_reference(x, g0, b0, gin, bin_, We, Wg1, bg1, W2, b2,
                         num_head=num_head, eps=eps)

    # f32 MXU-operand path, no mask
    out = jax.block_until_ready(dbow_forward(x, params, num_head=num_head, eps=eps))
    assert out.shape == (B, S, D)
    assert jnp.allclose(out, ref, atol=5e-4, rtol=5e-4), "f32 kernel mismatch vs reference"

    # fused-mask path
    out_m = jax.block_until_ready(
        dbow_forward(x, params, mask=mask, num_head=num_head, eps=eps))
    ref_m = dbow_reference(x, g0, b0, gin, bin_, We, Wg1, bg1, W2, b2,
                           num_head=num_head, eps=eps, mask=mask)
    assert jnp.allclose(out_m, ref_m, atol=5e-4, rtol=5e-4), "masked kernel mismatch"

    # bf16 MXU-operand path (recommended default on v5e/v6e/v7x); f32 accumulation.
    out_bf = jax.block_until_ready(
        dbow_forward(x, params, num_head=num_head, eps=eps, compute_dtype=jnp.bfloat16))
    abs_err = float(jnp.max(jnp.abs(out_bf - ref)))
    rel_err = abs_err / float(jnp.max(jnp.abs(ref)))
    assert abs_err < 0.5 and rel_err < 5e-2, (
        f"bf16 kernel diverged: abs={abs_err}, rel={rel_err}")

    print("KERNEL_OK")
</pallas_src>

<mosaic_0001>
module attributes {stable_mosaic.version = 11 : i64} {
  func.func @dbow_kernel(%arg0: i32, %arg1: memref<4x16x128xf32, #tpu.memory_space<vmem>>, %arg2: memref<1x128xf32, #tpu.memory_space<vmem>>, %arg3: memref<1x128xf32, #tpu.memory_space<vmem>>, %arg4: memref<4x128xf32, #tpu.memory_space<vmem>>, %arg5: memref<4x128xf32, #tpu.memory_space<vmem>>, %arg6: memref<640x256xf32, #tpu.memory_space<vmem>>, %arg7: memref<1x256xf32, #tpu.memory_space<vmem>>, %arg8: memref<256x128xf32, #tpu.memory_space<vmem>>, %arg9: memref<1x128xf32, #tpu.memory_space<vmem>>, %arg10: memref<4x16x128xf32, #tpu.memory_space<vmem>>) attributes {dimension_semantics = [#tpu.dimension_semantics<parallel>], iteration_bounds = array<i64: 1>, scalar_prefetch = 0 : i64, scratch_operands = 0 : i64, tpu.core_type = #tpu.core_type<tc>, window_params = [{transform_indices = @transform_0, window_bounds = array<i64: 4, 16, 128>}, {pipeline_mode = #tpu.pipeline_mode<synchronous>, transform_indices = @transform_1, window_bounds = array<i64: 1, 128>}, {pipeline_mode = #tpu.pipeline_mode<synchronous>, transform_indices = @transform_2, window_bounds = array<i64: 1, 128>}, {pipeline_mode = #tpu.pipeline_mode<synchronous>, transform_indices = @transform_3, window_bounds = array<i64: 4, 128>}, {pipeline_mode = #tpu.pipeline_mode<synchronous>, transform_indices = @transform_4, window_bounds = array<i64: 4, 128>}, {pipeline_mode = #tpu.pipeline_mode<synchronous>, transform_indices = @transform_5, window_bounds = array<i64: 640, 256>}, {pipeline_mode = #tpu.pipeline_mode<synchronous>, transform_indices = @transform_6, window_bounds = array<i64: 1, 256>}, {pipeline_mode = #tpu.pipeline_mode<synchronous>, transform_indices = @transform_7, window_bounds = array<i64: 256, 128>}, {pipeline_mode = #tpu.pipeline_mode<synchronous>, transform_indices = @transform_8, window_bounds = array<i64: 1, 128>}, {transform_indices = @transform_9, window_bounds = array<i64: 4, 16, 128>}]} {
    %c0 = arith.constant 0 : index
    %c0_0 = arith.constant 0 : index
    %c0_1 = arith.constant 0 : index
    %0 = vector.load %arg1[%c0, %c0_0, %c0_1] : memref<4x16x128xf32, #tpu.memory_space<vmem>>, vector<4x16x128xf32>
    %c0_2 = arith.constant 0 : index
    %c0_3 = arith.constant 0 : index
    %1 = vector.load %arg2[%c0_2, %c0_3] : memref<1x128xf32, #tpu.memory_space<vmem>>, vector<1x128xf32>
    %c0_4 = arith.constant 0 : index
    %c0_5 = arith.constant 0 : index
    %2 = vector.load %arg3[%c0_4, %c0_5] : memref<1x128xf32, #tpu.memory_space<vmem>>, vector<1x128xf32>
    %cst = arith.constant dense<0.000000e+00> : vector<4x16xf32>
    %3 = vector.multi_reduction <add>, %0, %cst [2] : vector<4x16x128xf32> to vector<4x16xf32>
    %4 = vector.shape_cast %3 : vector<4x16xf32> to vector<4x16x1xf32>
    %cst_6 = arith.constant 1.280000e+02 : f32
    %5 = vector.broadcast %cst_6 : f32 to vector<4x16x1xf32>
    %6 = arith.divf %4, %5 : vector<4x16x1xf32>
    %7 = vector.broadcast %6 : vector<4x16x1xf32> to vector<4x16x128xf32>
    %8 = arith.subf %0, %7 : vector<4x16x128xf32>
    %9 = arith.mulf %8, %8 : vector<4x16x128xf32>
    %cst_7 = arith.constant dense<0.000000e+00> : vector<4x16xf32>
    %10 = vector.multi_reduction <add>, %9, %cst_7 [2] : vector<4x16x128xf32> to vector<4x16xf32>
    %11 = vector.shape_cast %10 : vector<4x16xf32> to vector<4x16x1xf32>
    %cst_8 = arith.constant 1.280000e+02 : f32
    %12 = vector.broadcast %cst_8 : f32 to vector<4x16x1xf32>
    %13 = arith.divf %11, %12 : vector<4x16x1xf32>
    %cst_9 = arith.constant 9.99999997E-7 : f32
    %14 = vector.broadcast %cst_9 : f32 to vector<4x16x1xf32>
    %15 = arith.addf %13, %14 : vector<4x16x1xf32>
    %16 = math.rsqrt %15 : vector<4x16x1xf32>
    %17 = vector.broadcast %16 : vector<4x16x1xf32> to vector<4x16x128xf32>
    %18 = arith.mulf %8, %17 : vector<4x16x128xf32>
    %19 = vector.shape_cast %1 : vector<1x128xf32> to vector<1x1x128xf32>
    %20 = vector.broadcast %19 : vector<1x1x128xf32> to vector<4x16x128xf32>
    %21 = arith.mulf %18, %20 : vector<4x16x128xf32>
    %22 = vector.shape_cast %2 : vector<1x128xf32> to vector<1x1x128xf32>
    %23 = vector.broadcast %22 : vector<1x1x128xf32> to vector<4x16x128xf32>
    %24 = arith.addf %21, %23 : vector<4x16x128xf32>
    %cst_10 = arith.constant dense<0.000000e+00> : vector<4x128xf32>
    %25 = vector.multi_reduction <add>, %24, %cst_10 [1] : vector<4x16x128xf32> to vector<4x128xf32>
    %26 = vector.shape_cast %25 : vector<4x128xf32> to vector<4x1x128xf32>
    %27 = vector.shape_cast %0 : vector<4x16x128xf32> to vector<64x128xf32>
    %28 = vector.shape_cast %24 : vector<4x16x128xf32> to vector<64x128xf32>
    %29 = vector.shape_cast %26 : vector<4x1x128xf32> to vector<4x1x128xf32>
    %30 = vector.broadcast %29 : vector<4x1x128xf32> to vector<4x16x128xf32>
    %31 = vector.shape_cast %30 : vector<4x16x128xf32> to vector<64x128xf32>
    %32 = tpu.iota {dimensions = array<i32: 1>} : vector<4x16x1xi32>
    %33 = vector.shape_cast %32 : vector<4x16x1xi32> to vector<64x1xi32>
    %c1_i32 = arith.constant 1 : i32
    %34 = vector.broadcast %c1_i32 : i32 to vector<64x1xi32>
    %35 = arith.cmpi sge, %33, %34 : vector<64x1xi32>
    %c1_i32_11 = arith.constant 1 : i32
    %36 = tpu.dynamic_rotate %28 by %c1_i32_11 dim 0 : vector<64x128xf32>, i32 -> vector<64x128xf32>
    %cst_12 = arith.constant 0.000000e+00 : f32
    %37 = vector.shape_cast %35 : vector<64x1xi1> to vector<64x1xi1>
    %38 = vector.broadcast %37 : vector<64x1xi1> to vector<64x128xi1>
    %39 = vector.broadcast %cst_12 : f32 to vector<64x128xf32>
    %40 = arith.select %38, %36, %39 : vector<64x128xi1>, vector<64x128xf32>
    %41 = arith.addf %28, %40 : vector<64x128xf32>
    %c2_i32 = arith.constant 2 : i32
    %42 = vector.broadcast %c2_i32 : i32 to vector<64x1xi32>
    %43 = arith.cmpi sge, %33, %42 : vector<64x1xi32>
    %c2_i32_13 = arith.constant 2 : i32
    %44 = tpu.dynamic_rotate %41 by %c2_i32_13 dim 0 : vector<64x128xf32>, i32 -> vector<64x128xf32>
    %cst_14 = arith.constant 0.000000e+00 : f32
    %45 = vector.shape_cast %43 : vector<64x1xi1> to vector<64x1xi1>
    %46 = vector.broadcast %45 : vector<64x1xi1> to vector<64x128xi1>
    %47 = vector.broadcast %cst_14 : f32 to vector<64x128xf32>
    %48 = arith.select %46, %44, %47 : vector<64x128xi1>, vector<64x128xf32>
    %49 = arith.addf %41, %48 : vector<64x128xf32>
    %c4_i32 = arith.constant 4 : i32
    %50 = vector.broadcast %c4_i32 : i32 to vector<64x1xi32>
    %51 = arith.cmpi sge, %33, %50 : vector<64x1xi32>
    %c4_i32_15 = arith.constant 4 : i32
    %52 = tpu.dynamic_rotate %49 by %c4_i32_15 dim 0 : vector<64x128xf32>, i32 -> vector<64x128xf32>
    %cst_16 = arith.constant 0.000000e+00 : f32
    %53 = vector.shape_cast %51 : vector<64x1xi1> to vector<64x1xi1>
    %54 = vector.broadcast %53 : vector<64x1xi1> to vector<64x128xi1>
    %55 = vector.broadcast %cst_16 : f32 to vector<64x128xf32>
    %56 = arith.select %54, %52, %55 : vector<64x128xi1>, vector<64x128xf32>
    %57 = arith.addf %49, %56 : vector<64x128xf32>
    %c8_i32 = arith.constant 8 : i32
    %58 = vector.broadcast %c8_i32 : i32 to vector<64x1xi32>
    %59 = arith.cmpi sge, %33, %58 : vector<64x1xi32>
    %c8_i32_17 = arith.constant 8 : i32
    %60 = tpu.dynamic_rotate %57 by %c8_i32_17 dim 0 : vector<64x128xf32>, i32 -> vector<64x128xf32>
    %cst_18 = arith.constant 0.000000e+00 : f32
    %61 = vector.shape_cast %59 : vector<64x1xi1> to vector<64x1xi1>
    %62 = vector.broadcast %61 : vector<64x1xi1> to vector<64x128xi1>
    %63 = vector.broadcast %cst_18 : f32 to vector<64x128xf32>
    %64 = arith.select %62, %60, %63 : vector<64x128xi1>, vector<64x128xf32>
    %65 = arith.addf %57, %64 : vector<64x128xf32>
    %c5_i32 = arith.constant 5 : i32
    %66 = vector.broadcast %c5_i32 : i32 to vector<64x1xi32>
    %67 = arith.cmpi sge, %33, %66 : vector<64x1xi32>
    %c5_i32_19 = arith.constant 5 : i32
    %68 = tpu.dynamic_rotate %65 by %c5_i32_19 dim 0 : vector<64x128xf32>, i32 -> vector<64x128xf32>
    %cst_20 = arith.constant 0.000000e+00 : f32
    %69 = vector.shape_cast %67 : vector<64x1xi1> to vector<64x1xi1>
    %70 = vector.broadcast %69 : vector<64x1xi1> to vector<64x128xi1>
    %71 = vector.broadcast %cst_20 : f32 to vector<64x128xf32>
    %72 = arith.select %70, %68, %71 : vector<64x128xi1>, vector<64x128xf32>
    %c15_i32 = arith.constant 15 : i32
    %73 = vector.broadcast %c15_i32 : i32 to vector<64x1xi32>
    %74 = arith.cmpi slt, %33, %73 : vector<64x1xi32>
    %c63_i32 = arith.constant 63 : i32
    %75 = tpu.dynamic_rotate %65 by %c63_i32 dim 0 : vector<64x128xf32>, i32 -> vector<64x128xf32>
    %76 = vector.shape_cast %74 : vector<64x1xi1> to vector<64x1xi1>
    %77 = vector.broadcast %76 : vector<64x1xi1> to vector<64x128xi1>
    %78 = arith.select %77, %75, %31 : vector<64x128xi1>, vector<64x128xf32>
    %c11_i32 = arith.constant 11 : i32
    %79 = vector.broadcast %c11_i32 : i32 to vector<64x1xi32>
    %80 = arith.cmpi slt, %33, %79 : vector<64x1xi32>
    %c59_i32 = arith.constant 59 : i32
    %81 = tpu.dynamic_rotate %65 by %c59_i32 dim 0 : vector<64x128xf32>, i32 -> vector<64x128xf32>
    %82 = vector.shape_cast %80 : vector<64x1xi1> to vector<64x1xi1>
    %83 = vector.broadcast %82 : vector<64x1xi1> to vector<64x128xi1>
    %84 = arith.select %83, %81, %31 : vector<64x128xi1>, vector<64x128xf32>
    %85 = arith.subf %31, %78 : vector<64x128xf32>
    %86 = arith.subf %65, %72 : vector<64x128xf32>
    %c1_i32_21 = arith.constant 1 : i32
    %87 = vector.broadcast %c1_i32_21 : i32 to vector<64x1xi32>
    %88 = arith.cmpi sge, %33, %87 : vector<64x1xi32>
    %c1_i32_22 = arith.constant 1 : i32
    %89 = tpu.dynamic_rotate %86 by %c1_i32_22 dim 0 : vector<64x128xf32>, i32 -> vector<64x128xf32>
    %cst_23 = arith.constant 0.000000e+00 : f32
    %90 = vector.shape_cast %88 : vector<64x1xi1> to vector<64x1xi1>
    %91 = vector.broadcast %90 : vector<64x1xi1> to vector<64x128xi1>
    %92 = vector.broadcast %cst_23 : f32 to vector<64x128xf32>
    %93 = arith.select %91, %89, %92 : vector<64x128xi1>, vector<64x128xf32>
    %94 = arith.subf %84, %65 : vector<64x128xf32>
    %95 = arith.subf %72, %93 : vector<64x128xf32>
    %96 = arith.subf %85, %94 : vector<64x128xf32>
    %97 = arith.addf %72, %85 : vector<64x128xf32>
    %cst_24 = arith.constant dense<0.000000e+00> : vector<64xf32>
    %98 = vector.multi_reduction <add>, %97, %cst_24 [1] : vector<64x128xf32> to vector<64xf32>
    %99 = vector.shape_cast %98 : vector<64xf32> to vector<64x1xf32>
    %cst_25 = arith.constant 0.001953125 : f32
    %100 = vector.broadcast %cst_25 : f32 to vector<64x1xf32>
    %101 = arith.mulf %99, %100 : vector<64x1xf32>
    %102 = vector.broadcast %101 : vector<64x1xf32> to vector<64x128xf32>
    %103 = arith.subf %95, %102 : vector<64x128xf32>
    %104 = vector.broadcast %101 : vector<64x1xf32> to vector<64x128xf32>
    %105 = arith.subf %93, %104 : vector<64x128xf32>
    %106 = vector.broadcast %101 : vector<64x1xf32> to vector<64x128xf32>
    %107 = arith.subf %94, %106 : vector<64x128xf32>
    %108 = vector.broadcast %101 : vector<64x1xf32> to vector<64x128xf32>
    %109 = arith.subf %96, %108 : vector<64x128xf32>
    %110 = arith.mulf %103, %103 : vector<64x128xf32>
    %111 = arith.mulf %105, %105 : vector<64x128xf32>
    %112 = arith.addf %110, %111 : vector<64x128xf32>
    %113 = arith.mulf %107, %107 : vector<64x128xf32>
    %114 = arith.addf %112, %113 : vector<64x128xf32>
    %115 = arith.mulf %109, %109 : vector<64x128xf32>
    %116 = arith.addf %114, %115 : vector<64x128xf32>
    %cst_26 = arith.constant dense<0.000000e+00> : vector<64xf32>
    %117 = vector.multi_reduction <add>, %116, %cst_26 [1] : vector<64x128xf32> to vector<64xf32>
    %118 = vector.shape_cast %117 : vector<64xf32> to vector<64x1xf32>
    %cst_27 = arith.constant 0.001953125 : f32
    %119 = vector.broadcast %cst_27 : f32 to vector<64x1xf32>
    %120 = arith.mulf %118, %119 : vector<64x1xf32>
    %cst_28 = arith.constant 9.99999997E-7 : f32
    %121 = vector.broadcast %cst_28 : f32 to vector<64x1xf32>
    %122 = arith.addf %120, %121 : vector<64x1xf32>
    %123 = math.rsqrt %122 : vector<64x1xf32>
    %c0_29 = arith.constant 0 : index
    %c0_30 = arith.constant 0 : index
    %124 = vector.load %arg4[%c0_29, %c0_30] : memref<4x128xf32, #tpu.memory_space<vmem>>, vector<4x128xf32>
    %c0_31 = arith.constant 0 : index
    %c0_32 = arith.constant 0 : index
    %125 = vector.load %arg5[%c0_31, %c0_32] : memref<4x128xf32, #tpu.memory_space<vmem>>, vector<4x128xf32>
    %126 = vector.broadcast %123 : vector<64x1xf32> to vector<64x128xf32>
    %127 = arith.mulf %103, %126 : vector<64x128xf32>
    %128 = vector.extract_strided_slice %124 {offsets = [0, 0], sizes = [1, 128], strides = [1, 1]} : vector<4x128xf32> to vector<1x128xf32>
    %129 = vector.broadcast %128 : vector<1x128xf32> to vector<64x128xf32>
    %130 = arith.mulf %127, %129 : vector<64x128xf32>
    %131 = vector.extract_strided_slice %125 {offsets = [0, 0], sizes = [1, 128], strides = [1, 1]} : vector<4x128xf32> to vector<1x128xf32>
    %132 = vector.broadcast %131 : vector<1x128xf32> to vector<64x128xf32>
    %133 = arith.addf %130, %132 : vector<64x128xf32>
    %134 = vector.broadcast %123 : vector<64x1xf32> to vector<64x128xf32>
    %135 = arith.mulf %105, %134 : vector<64x128xf32>
    %136 = vector.extract_strided_slice %124 {offsets = [1, 0], sizes = [1, 128], strides = [1, 1]} : vector<4x128xf32> to vector<1x128xf32>
    %137 = vector.broadcast %136 : vector<1x128xf32> to vector<64x128xf32>
    %138 = arith.mulf %135, %137 : vector<64x128xf32>
    %139 = vector.extract_strided_slice %125 {offsets = [1, 0], sizes = [1, 128], strides = [1, 1]} : vector<4x128xf32> to vector<1x128xf32>
    %140 = vector.broadcast %139 : vector<1x128xf32> to vector<64x128xf32>
    %141 = arith.addf %138, %140 : vector<64x128xf32>
    %142 = vector.broadcast %123 : vector<64x1xf32> to vector<64x128xf32>
    %143 = arith.mulf %107, %142 : vector<64x128xf32>
    %144 = vector.extract_strided_slice %124 {offsets = [2, 0], sizes = [1, 128], strides = [1, 1]} : vector<4x128xf32> to vector<1x128xf32>
    %145 = vector.broadcast %144 : vector<1x128xf32> to vector<64x128xf32>
    %146 = arith.mulf %143, %145 : vector<64x128xf32>
    %147 = vector.extract_strided_slice %125 {offsets = [2, 0], sizes = [1, 128], strides = [1, 1]} : vector<4x128xf32> to vector<1x128xf32>
    %148 = vector.broadcast %147 : vector<1x128xf32> to vector<64x128xf32>
    %149 = arith.addf %146, %148 : vector<64x128xf32>
    %150 = vector.broadcast %123 : vector<64x1xf32> to vector<64x128xf32>
    %151 = arith.mulf %109, %150 : vector<64x128xf32>
    %152 = vector.extract_strided_slice %124 {offsets = [3, 0], sizes = [1, 128], strides = [1, 1]} : vector<4x128xf32> to vector<1x128xf32>
    %153 = vector.broadcast %152 : vector<1x128xf32> to vector<64x128xf32>
    %154 = arith.mulf %151, %153 : vector<64x128xf32>
    %155 = vector.extract_strided_slice %125 {offsets = [3, 0], sizes = [1, 128], strides = [1, 1]} : vector<4x128xf32> to vector<1x128xf32>
    %156 = vector.broadcast %155 : vector<1x128xf32> to vector<64x128xf32>
    %157 = arith.addf %154, %156 : vector<64x128xf32>
    %158 = tpu.concatenate %133, %141, %149, %157, %28 in 1 : vector<64x128xf32>, vector<64x128xf32>, vector<64x128xf32>, vector<64x128xf32>, vector<64x128xf32> -> vector<64x640xf32>
    %c0_33 = arith.constant 0 : index
    %c0_34 = arith.constant 0 : index
    %159 = vector.load %arg6[%c0_33, %c0_34] : memref<640x256xf32, #tpu.memory_space<vmem>>, vector<640x256xf32>
    %cst_35 = arith.constant dense<0.000000e+00> : vector<64x256xf32>
    %160 = tpu.matmul %158, %159, %cst_35 {dimension_numbers = #tpu.dot_dimension_numbers<[1], [0], [0], [1], [0, 0, 1, 1], [], []>} : vector<64x640xf32>, vector<640x256xf32>, vector<64x256xf32> -> vector<64x256xf32>
    %c0_36 = arith.constant 0 : index
    %c0_37 = arith.constant 0 : index
    %161 = vector.load %arg7[%c0_36, %c0_37] : memref<1x256xf32, #tpu.memory_space<vmem>>, vector<1x256xf32>
    %162 = vector.broadcast %161 : vector<1x256xf32> to vector<64x256xf32>
    %163 = arith.addf %160, %162 : vector<64x256xf32>
    %cst_38 = arith.constant 0.000000e+00 : f32
    %164 = vector.broadcast %cst_38 : f32 to vector<64x256xf32>
    %165 = arith.maximumf %163, %164 : vector<64x256xf32>
    %c0_39 = arith.constant 0 : index
    %c0_40 = arith.constant 0 : index
    %166 = vector.load %arg8[%c0_39, %c0_40] : memref<256x128xf32, #tpu.memory_space<vmem>>, vector<256x128xf32>
    %cst_41 = arith.constant dense<0.000000e+00> : vector<64x128xf32>
    %167 = tpu.matmul %165, %166, %cst_41 {dimension_numbers = #tpu.dot_dimension_numbers<[1], [0], [0], [1], [0, 0, 1, 1], [], []>} : vector<64x256xf32>, vector<256x128xf32>, vector<64x128xf32> -> vector<64x128xf32>
    %c0_42 = arith.constant 0 : index
    %c0_43 = arith.constant 0 : index
    %168 = vector.load %arg9[%c0_42, %c0_43] : memref<1x128xf32, #tpu.memory_space<vmem>>, vector<1x128xf32>
    %169 = vector.broadcast %168 : vector<1x128xf32> to vector<64x128xf32>
    %170 = arith.addf %167, %169 : vector<64x128xf32>
    %171 = arith.addf %170, %27 : vector<64x128xf32>
    %172 = vector.shape_cast %171 : vector<64x128xf32> to vector<4x16x128xf32>
    %c0_44 = arith.constant 0 : index
    %c0_45 = arith.constant 0 : index
    %c0_46 = arith.constant 0 : index
    %173 = vector.load %arg10[%c0_44, %c0_45, %c0_46] : memref<4x16x128xf32, #tpu.memory_space<vmem>>, vector<4x16x128xf32>
    tpu.vector_store %arg10[%c0_44, %c0_45, %c0_46], %172 {strides = array<i32>} : memref<4x16x128xf32, #tpu.memory_space<vmem>>, vector<4x16x128xf32>,
    return
  }
  func.func @transform_0(%arg0: i32) -> (i32, i32, i32) {
    %c0_i32 = arith.constant 0 : i32
    %c0_i32_0 = arith.constant 0 : i32
    %c0_i32_1 = arith.constant 0 : i32
    return %arg0, %c0_i32, %c0_i32_0 : i32, i32, i32
  }
  func.func @transform_1(%arg0: i32) -> (i32, i32) {
    %c0_i32 = arith.constant 0 : i32
    %c0_i32_0 = arith.constant 0 : i32
    %c0_i32_1 = arith.constant 0 : i32
    return %c0_i32, %c0_i32_0 : i32, i32
  }
  func.func @transform_2(%arg0: i32) -> (i32, i32) {
    %c0_i32 = arith.constant 0 : i32
    %c0_i32_0 = arith.constant 0 : i32
    %c0_i32_1 = arith.constant 0 : i32
    return %c0_i32, %c0_i32_0 : i32, i32
  }
  func.func @transform_3(%arg0: i32) -> (i32, i32) {
    %c0_i32 = arith.constant 0 : i32
    %c0_i32_0 = arith.constant 0 : i32
    %c0_i32_1 = arith.constant 0 : i32
    return %c0_i32, %c0_i32_0 : i32, i32
  }
  func.func @transform_4(%arg0: i32) -> (i32, i32) {
    %c0_i32 = arith.constant 0 : i32
    %c0_i32_0 = arith.constant 0 : i32
    %c0_i32_1 = arith.constant 0 : i32
    return %c0_i32, %c0_i32_0 : i32, i32
  }
  func.func @transform_5(%arg0: i32) -> (i32, i32) {
    %c0_i32 = arith.constant 0 : i32
    %c0_i32_0 = arith.constant 0 : i32
    %c0_i32_1 = arith.constant 0 : i32
    return %c0_i32, %c0_i32_0 : i32, i32
  }
  func.func @transform_6(%arg0: i32) -> (i32, i32) {
    %c0_i32 = arith.constant 0 : i32
    %c0_i32_0 = arith.constant 0 : i32
    %c0_i32_1 = arith.constant 0 : i32
    return %c0_i32, %c0_i32_0 : i32, i32
  }
  func.func @transform_7(%arg0: i32) -> (i32, i32) {
    %c0_i32 = arith.constant 0 : i32
    %c0_i32_0 = arith.constant 0 : i32
    %c0_i32_1 = arith.constant 0 : i32
    return %c0_i32, %c0_i32_0 : i32, i32
  }
  func.func @transform_8(%arg0: i32) -> (i32, i32) {
    %c0_i32 = arith.constant 0 : i32
    %c0_i32_0 = arith.constant 0 : i32
    %c0_i32_1 = arith.constant 0 : i32
    return %c0_i32, %c0_i32_0 : i32, i32
  }
  func.func @transform_9(%arg0: i32) -> (i32, i32, i32) {
    %c0_i32 = arith.constant 0 : i32
    %c0_i32_0 = arith.constant 0 : i32
    %c0_i32_1 = arith.constant 0 : i32
    return %arg0, %c0_i32, %c0_i32_0 : i32, i32, i32
  }
}

</mosaic_0001>

<llo_original>
// kernel: tpu_custom_call.1
$region0: #{tpu_custom_call.1}
  #allocation0 [shape = 'u32[]', space=smem, size = 0x4, offset = 0x4, fixed_abs, tag = 'smem constant byte address 0x4 - core index']
  #allocation1 [shape = 'u32[72,128]{1,0:T(1,128)}', space=vmem, size = 0x9000, scoped, tag = 'internal scratch']
  %s0 = inlined_call_operand.hbm [shape: f32[4,16,128], index: 0, kind: input, shape index: {}]
  %s1 = inlined_call_operand.hbm [shape: f32[1,128], index: 1, kind: input, shape index: {}]
  %s2 = inlined_call_operand.vmem [shape: f32[1,128], index: 2, kind: input, shape index: {}]
  %s3 = inlined_call_operand.hbm [shape: f32[4,128], index: 3, kind: input, shape index: {}]
  %s4 = inlined_call_operand.hbm [shape: f32[4,128], index: 4, kind: input, shape index: {}]
  %s5 = inlined_call_operand.hbm [shape: f32[640,256], index: 5, kind: input, shape index: {}]
  %s6 = inlined_call_operand.vmem [shape: f32[1,256], index: 6, kind: input, shape index: {}]
  %s7 = inlined_call_operand.hbm [shape: f32[256,128], index: 7, kind: input, shape index: {}]
  %s8 = inlined_call_operand.vmem [shape: f32[1,128], index: 8, kind: input, shape index: {}]
  %s9 = inlined_call_operand.hbm [shape: f32[4,16,128], index: 9, kind: output, shape index: {}]
  %s10 = sld [smem:[#allocation0]]
  $region70: #{tpu_custom_call.1} parent=0
    _
  %s12 = ssub.s32 1, %s10
  %s13 = scalar_select 0, %s12, %s10
  $region1: #{tpu_custom_call.1} parent=0
    #allocation2 [shape = 'u8[32768]{0}', space=vmem, size = 0x8000, scoped, tag = 'input window, operand 0, single buffered']
    #allocation3 [shape = 's32[1]{0}', space=sflag, size = 0x4, scoped, tag = 'scoped memory for tpu_custom_call.1']
    #allocation4 [shape = 's32[1]{0}', space=sflag, size = 0x4, scoped, tag = 'scoped memory for tpu_custom_call.1']
    #allocation5 [shape = 'u8[512]{0}', space=vmem, size = 0x400, scoped, tag = 'input window, operand 1, single buffered']
    #allocation6 [shape = 's32[1]{0}', space=sflag, size = 0x4, scoped, tag = 'scoped memory for tpu_custom_call.1']
    #allocation7 [shape = 'u8[2048]{0}', space=vmem, size = 0x800, scoped, tag = 'input window, operand 3, single buffered']
    #allocation8 [shape = 'u8[2048]{0}', space=vmem, size = 0x800, scoped, tag = 'input window, operand 4, single buffered']
    #allocation9 [shape = 's32[1]{0}', space=sflag, size = 0x4, scoped, tag = 'scoped memory for tpu_custom_call.1']
    #allocation10 [shape = 'u8[655360]{0}', space=vmem, size = 0xa0000, scoped, tag = 'input window, operand 5, single buffered']
    #allocation11 [shape = 'u8[131072]{0}', space=vmem, size = 0x20000, scoped, tag = 'input window, operand 7, single buffered']
    #allocation12 [shape = 's32[1]{0}', space=sflag, size = 0x4, scoped, tag = 'scoped memory for tpu_custom_call.1']
    #allocation13 [shape = 'u8[32768]{0}', space=vmem, size = 0x8000, scoped, tag = 'output window, operand 0, single buffered']
    %14 = vsyncpa [#allocation3], 0
    %15 = vsyncpa [#allocation6], 0
    %16 = vsyncpa [#allocation9], 0
    %17 = vsyncpa [#allocation12], 0
    %18 = vsyncpa [#allocation4], 0
    // Predicated region
    $region2: #{tpu_custom_call.1} parent=1 // pred_check
      _
    $region3: #{tpu_custom_call.1} parent=1 // pred_check_branch
      %20 = sbr.rel (0) target = $region5
    $region4: #{tpu_custom_call.1} parent=1 // pred_region
      %22 = vsyncadd [#allocation3], 0
      %s23 = sshll.u32 %s0, 4
      %s24 = int_to_ptr.hbm [resolvable:$true] %s23
      %s25 = sshll.u32 [#allocation2], 4
      %s26 = int_to_ptr.vmem [resolvable:$true] %s25
      %31 = dma.hbm_to_vmem [thread:$0]  %s24, 1024, %s26, [#allocation3], 128, 128, 8
    $region5: #{tpu_custom_call.1} parent=1 // pred_fallthru
      _
    // Predicated region
    $region6: #{tpu_custom_call.1} parent=1 // pred_check
      _
    $region7: #{tpu_custom_call.1} parent=1 // pred_check_branch
      %33 = sbr.rel (0) target = $region9
    $region8: #{tpu_custom_call.1} parent=1 // pred_region
      %35 = vsyncadd [#allocation6], 0
      %s37 = sshll.u32 %s1, 4
      %s38 = int_to_ptr.hbm [resolvable:$true] %s37
      %s39 = sshll.u32 [#allocation5], 4
      %s40 = int_to_ptr.vmem [resolvable:$true] %s39
      %42 = dma.hbm_to_vmem [thread:$0]  %s38, 16, %s40, [#allocation6]
    $region9: #{tpu_custom_call.1} parent=1 // pred_fallthru
      _
    // Predicated region
    $region10: #{tpu_custom_call.1} parent=1 // pred_check
      _
    $region11: #{tpu_custom_call.1} parent=1 // pred_check_branch
      %44 = sbr.rel (0) target = $region13
    $region12: #{tpu_custom_call.1} parent=1 // pred_region
      _
    $region13: #{tpu_custom_call.1} parent=1 // pred_fallthru
      _
    // Predicated region
    $region14: #{tpu_custom_call.1} parent=1 // pred_check
      _
    $region15: #{tpu_custom_call.1} parent=1 // pred_check_branch
      %46 = sbr.rel (0) target = $region17
    $region16: #{tpu_custom_call.1} parent=1 // pred_region
      %48 = vsyncadd [#allocation6], 0
      %s50 = sshll.u32 %s3, 4
      %s51 = int_to_ptr.hbm [resolvable:$true] %s50
      %s52 = sshll.u32 [#allocation7], 4
      %s53 = int_to_ptr.vmem [resolvable:$true] %s52
      %55 = dma.hbm_to_vmem [thread:$0]  %s51, 64, %s53, [#allocation6]
    $region17: #{tpu_custom_call.1} parent=1 // pred_fallthru
      _
    // Predicated region
    $region18: #{tpu_custom_call.1} parent=1 // pred_check
      _
    $region19: #{tpu_custom_call.1} parent=1 // pred_check_branch
      %57 = sbr.rel (0) target = $region21
    $region20: #{tpu_custom_call.1} parent=1 // pred_region
      %59 = vsyncadd [#allocation9], 0
      %s61 = sshll.u32 %s4, 4
      %s62 = int_to_ptr.hbm [resolvable:$true] %s61
      %s63 = sshll.u32 [#allocation8], 4
      %s64 = int_to_ptr.vmem [resolvable:$true] %s63
      %66 = dma.hbm_to_vmem [thread:$0]  %s62, 64, %s64, [#allocation9]
    $region21: #{tpu_custom_call.1} parent=1 // pred_fallthru
      _
    // Predicated region
    $region22: #{tpu_custom_call.1} parent=1 // pred_check
      _
    $region23: #{tpu_custom_call.1} parent=1 // pred_check_branch
      %68 = sbr.rel (0) target = $region25
    $region24: #{tpu_custom_call.1} parent=1 // pred_region
      %70 = vsyncadd [#allocation9], 0
      %s71 = sshll.u32 %s5, 4
      %s72 = int_to_ptr.hbm [resolvable:$true] %s71
      %s73 = sshll.u32 [#allocation10], 4
      %s74 = int_to_ptr.vmem [resolvable:$true] %s73
      %79 = dma.hbm_to_vmem [thread:$0]  %s72, 20480, %s74, [#allocation9], 256, 256, 16
    $region25: #{tpu_custom_call.1} parent=1 // pred_fallthru
      _
    // Predicated region
    $region26: #{tpu_custom_call.1} parent=1 // pred_check
      _
    $region27: #{tpu_custom_call.1} parent=1 // pred_check_branch
      %81 = sbr.rel (0) target = $region29
    $region28: #{tpu_custom_call.1} parent=1 // pred_region
      _
    $region29: #{tpu_custom_call.1} parent=1 // pred_fallthru
      _
    // Predicated region
    $region30: #{tpu_custom_call.1} parent=1 // pred_check
      _
    $region31: #{tpu_custom_call.1} parent=1 // pred_check_branch
      %83 = sbr.rel (0) target = $region33
    $region32: #{tpu_custom_call.1} parent=1 // pred_region
      %85 = vsyncadd [#allocation12], 0
      %s86 = sshll.u32 %s7, 4
      %s87 = int_to_ptr.hbm [resolvable:$true] %s86
      %s88 = sshll.u32 [#allocation11], 4
      %s89 = int_to_ptr.vmem [resolvable:$true] %s88
      %94 = dma.hbm_to_vmem [thread:$0]  %s87, 4096, %s89, [#allocation12], 128, 128, 8
    $region33: #{tpu_custom_call.1} parent=1 // pred_fallthru
      _
    // Predicated region
    $region34: #{tpu_custom_call.1} parent=1 // pred_check
      _
    $region35: #{tpu_custom_call.1} parent=1 // pred_check_branch
      %96 = sbr.rel (0) target = $region37
    $region36: #{tpu_custom_call.1} parent=1 // pred_region
      _
    $region37: #{tpu_custom_call.1} parent=1 // pred_fallthru
      _
    // Predicated region
    $region38: #{tpu_custom_call.1} parent=1 // pred_check
      _
    $region39: #{tpu_custom_call.1} parent=1 // pred_check_branch
      %98 = sbr.rel (0) target = $region41
    $region40: #{tpu_custom_call.1} parent=1 // pred_region
      %100 = dma.done [#allocation3], 1024
    $region41: #{tpu_custom_call.1} parent=1 // pred_fallthru
      _
    // Predicated region
    $region42: #{tpu_custom_call.1} parent=1 // pred_check
      _
    $region43: #{tpu_custom_call.1} parent=1 // pred_check_branch
      %102 = sbr.rel (0) target = $region45
    $region44: #{tpu_custom_call.1} parent=1 // pred_region
      %104 = dma.done [#allocation6], 16
    $region45: #{tpu_custom_call.1} parent=1 // pred_fallthru
      _
    // Predicated region
    $region46: #{tpu_custom_call.1} parent=1 // pred_check
      _
    $region47: #{tpu_custom_call.1} parent=1 // pred_check_branch
      %106 = sbr.rel (0) target = $region49
    $region48: #{tpu_custom_call.1} parent=1 // pred_region
      %108 = dma.done [#allocation6], 64
    $region49: #{tpu_custom_call.1} parent=1 // pred_fallthru
      _
    // Predicated region
    $region50: #{tpu_custom_call.1} parent=1 // pred_check
      _
    $region51: #{tpu_custom_call.1} parent=1 // pred_check_branch
      %110 = sbr.rel (0) target = $region53
    $region52: #{tpu_custom_call.1} parent=1 // pred_region
      %112 = dma.done [#allocation9], 64
    $region53: #{tpu_custom_call.1} parent=1 // pred_fallthru
      _
    // Predicated region
    $region54: #{tpu_custom_call.1} parent=1 // pred_check
      _
    $region55: #{tpu_custom_call.1} parent=1 // pred_check_branch
      %114 = sbr.rel (0) target = $region57
    $region56: #{tpu_custom_call.1} parent=1 // pred_region
      %116 = dma.done [#allocation9], 20480
    $region57: #{tpu_custom_call.1} parent=1 // pred_fallthru
      _
    // Predicated region
    $region58: #{tpu_custom_call.1} parent=1 // pred_check
      _
    $region59: #{tpu_custom_call.1} parent=1 // pred_check_branch
      %118 = sbr.rel (0) target = $region61
    $region60: #{tpu_custom_call.1} parent=1 // pred_region
      %120 = dma.done [#allocation12], 4096
    $region61: #{tpu_custom_call.1} parent=1 // pred_fallthru
      _
    %v121 = vld [vmem:[#allocation2] sm:$0xff]
    %v122 = vld [vmem:[#allocation2 + $0x8] sm:$0xff]
    %v123 = vld [vmem:[#allocation2 + $0x10] sm:$0xff]
    %v124 = vld [vmem:[#allocation2 + $0x18] sm:$0xff]
    %v125 = vld [vmem:[#allocation2 + $0x20] sm:$0xff]
    %v126 = vld [vmem:[#allocation2 + $0x28] sm:$0xff]
    %v127 = vld [vmem:[#allocation2 + $0x30] sm:$0xff]
    %v128 = vld [vmem:[#allocation2 + $0x38] sm:$0xff]
    %v129 = vld [vmem:[#allocation5] sm:$0x1]
    %v130 = vld [vmem:[%s2] sm:$0x1]
    %131 = vadd.xlane.f32.xlu0 %v121
    %v132 = vpop.xlane.xlu0 %131
    %133 = vadd.xlane.f32.xlu0 %v122
    %v134 = vpop.xlane.xlu0 %133
    %135 = vadd.xlane.f32.xlu0 %v123
    %v136 = vpop.xlane.xlu0 %135
    %137 = vadd.xlane.f32.xlu0 %v124
    %v138 = vpop.xlane.xlu0 %137
    %139 = vadd.xlane.f32.xlu0 %v125
    %v140 = vpop.xlane.xlu0 %139
    %141 = vadd.xlane.f32.xlu0 %v126
    %v142 = vpop.xlane.xlu0 %141
    %143 = vadd.xlane.f32.xlu0 %v127
    %v144 = vpop.xlane.xlu0 %143
    %145 = vadd.xlane.f32.xlu0 %v128
    %v146 = vpop.xlane.xlu0 %145
    %v147 = vrcp.pop 128.0
    %v148 = vmul.f32 128.0, %v147
    %v149 = vsub.f32 1.0, %v148
    %v150 = vmul.f32 %v147, %v149
    %v151 = vadd.f32 %v147, %v150
    %vm152 = vweird.f32 %v147
    %v153 = vsel %vm152, %v147, %v151
    %v154 = vmul.f32 %v132, %v153
    %v155 = vmul.f32 %v134, %v153
    %v156 = vmul.f32 %v136, %v153
    %v157 = vmul.f32 %v138, %v153
    %v158 = vmul.f32 %v140, %v153
    %v159 = vmul.f32 %v142, %v153
    %v160 = vmul.f32 %v144, %v153
    %v161 = vmul.f32 %v146, %v153
    %v162 = vsub.f32 %v121, %v154
    %v163 = vsub.f32 %v122, %v155
    %v164 = vsub.f32 %v123, %v156
    %v165 = vsub.f32 %v124, %v157
    %v166 = vsub.f32 %v125, %v158
    %v167 = vsub.f32 %v126, %v159
    %v168 = vsub.f32 %v127, %v160
    %v169 = vsub.f32 %v128, %v161
    %v170 = vmul.f32 %v162, %v162
    %v171 = vmul.f32 %v163, %v163
    %v172 = vmul.f32 %v164, %v164
    %v173 = vmul.f32 %v165, %v165
    %v174 = vmul.f32 %v166, %v166
    %v175 = vmul.f32 %v167, %v167
    %v176 = vmul.f32 %v168, %v168
    %v177 = vmul.f32 %v169, %v169
    %178 = vadd.xlane.f32.xlu0 %v170
    %v179 = vpop.xlane.xlu0 %178
    %180 = vadd.xlane.f32.xlu0 %v171
    %v181 = vpop.xlane.xlu0 %180
    %182 = vadd.xlane.f32.xlu0 %v172
    %v183 = vpop.xlane.xlu0 %182
    %184 = vadd.xlane.f32.xlu0 %v173
    %v185 = vpop.xlane.xlu0 %184
    %186 = vadd.xlane.f32.xlu0 %v174
    %v187 = vpop.xlane.xlu0 %186
    %188 = vadd.xlane.f32.xlu0 %v175
    %v189 = vpop.xlane.xlu0 %188
    %190 = vadd.xlane.f32.xlu0 %v176
    %v191 = vpop.xlane.xlu0 %190
    %192 = vadd.xlane.f32.xlu0 %v177
    %v193 = vpop.xlane.xlu0 %192
    %v194 = vmul.f32 %v179, %v153
    %v195 = vmul.f32 %v181, %v153
    %v196 = vmul.f32 %v183, %v153
    %v197 = vmul.f32 %v185, %v153
    %v198 = vmul.f32 %v187, %v153
    %v199 = vmul.f32 %v189, %v153
    %v200 = vmul.f32 %v191, %v153
    %v201 = vmul.f32 %v193, %v153
    %v202 = vadd.f32 %v194, 1e-06
    %v203 = vadd.f32 %v195, 1e-06
    %v204 = vadd.f32 %v196, 1e-06
    %v205 = vadd.f32 %v197, 1e-06
    %v206 = vadd.f32 %v198, 1e-06
    %v207 = vadd.f32 %v199, 1e-06
    %v208 = vadd.f32 %v200, 1e-06
    %v209 = vadd.f32 %v201, 1e-06
    %v210 = vrsqrt.pop %v202
    %v211 = vmul.f32 %v210, %v202
    %v212 = vmul.f32 %v211, %v210
    %v213 = vmul.f32 0.5, %v212
    %v214 = vsub.f32 1.5, %v213
    %v215 = vmul.f32 %v210, %v214
    %vm216 = vweird.f32 %v202
    %vm217 = vweird.f32 %v210
    %vm218 = vmor %vm216, %vm217
    %v219 = vsel %vm218, %v210, %v215
    %v220 = vrsqrt.pop %v203
    %v221 = vmul.f32 %v220, %v203
    %v222 = vmul.f32 %v221, %v220
    %v223 = vmul.f32 0.5, %v222
    %v224 = vsub.f32 1.5, %v223
    %v225 = vmul.f32 %v220, %v224
    %vm226 = vweird.f32 %v203
    %vm227 = vweird.f32 %v220
    %vm228 = vmor %vm226, %vm227
    %v229 = vsel %vm228, %v220, %v225
    %v230 = vrsqrt.pop %v204
    %v231 = vmul.f32 %v230, %v204
    %v232 = vmul.f32 %v231, %v230
    %v233 = vmul.f32 0.5, %v232
    %v234 = vsub.f32 1.5, %v233
    %v235 = vmul.f32 %v230, %v234
    %vm236 = vweird.f32 %v204
    %vm237 = vweird.f32 %v230
    %vm238 = vmor %vm236, %vm237
    %v239 = vsel %vm238, %v230, %v235
    %v240 = vrsqrt.pop %v205
    %v241 = vmul.f32 %v240, %v205
    %v242 = vmul.f32 %v241, %v240
    %v243 = vmul.f32 0.5, %v242
    %v244 = vsub.f32 1.5, %v243
    %v245 = vmul.f32 %v240, %v244
    %vm246 = vweird.f32 %v205
    %vm247 = vweird.f32 %v240
    %vm248 = vmor %vm246, %vm247
    %v249 = vsel %vm248, %v240, %v245
    %v250 = vrsqrt.pop %v206
    %v251 = vmul.f32 %v250, %v206
    %v252 = vmul.f32 %v251, %v250
    %v253 = vmul.f32 0.5, %v252
    %v254 = vsub.f32 1.5, %v253
    %v255 = vmul.f32 %v250, %v254
    %vm256 = vweird.f32 %v206
    %vm257 = vweird.f32 %v250
    %vm258 = vmor %vm256, %vm257
    %v259 = vsel %vm258, %v250, %v255
    %v260 = vrsqrt.pop %v207
    %v261 = vmul.f32 %v260, %v207
    %v262 = vmul.f32 %v261, %v260
    %v263 = vmul.f32 0.5, %v262
    %v264 = vsub.f32 1.5, %v263
    %v265 = vmul.f32 %v260, %v264
    %vm266 = vweird.f32 %v207
    %vm267 = vweird.f32 %v260
    %vm268 = vmor %vm266, %vm267
    %v269 = vsel %vm268, %v260, %v265
    %v270 = vrsqrt.pop %v208
    %v271 = vmul.f32 %v270, %v208
    %v272 = vmul.f32 %v271, %v270
    %v273 = vmul.f32 0.5, %v272
    %v274 = vsub.f32 1.5, %v273
    %v275 = vmul.f32 %v270, %v274
    %vm276 = vweird.f32 %v208
    %vm277 = vweird.f32 %v270
    %vm278 = vmor %vm276, %vm277
    %v279 = vsel %vm278, %v270, %v275
    %v280 = vrsqrt.pop %v209
    %v281 = vmul.f32 %v280, %v209
    %v282 = vmul.f32 %v281, %v280
    %v283 = vmul.f32 0.5, %v282
    %v284 = vsub.f32 1.5, %v283
    %v285 = vmul.f32 %v280, %v284
    %vm286 = vweird.f32 %v209
    %vm287 = vweird.f32 %v280
    %vm288 = vmor %vm286, %vm287
    %v289 = vsel %vm288, %v280, %v285
    %v290 = vmul.f32 %v162, %v219
    %v291 = vmul.f32 %v163, %v229
    %v292 = vmul.f32 %v164, %v239
    %v293 = vmul.f32 %v165, %v249
    %v294 = vmul.f32 %v166, %v259
    %v295 = vmul.f32 %v167, %v269
    %v296 = vmul.f32 %v168, %v279
    %v297 = vmul.f32 %v169, %v289
    %v299 = vperm.slane %v129, 0
    %v301 = vmul.f32 %v290, %v299
    %v302 = vmul.f32 %v291, %v299
    %v303 = vmul.f32 %v292, %v299
    %v304 = vmul.f32 %v293, %v299
    %v305 = vmul.f32 %v294, %v299
    %v306 = vmul.f32 %v295, %v299
    %v307 = vmul.f32 %v296, %v299
    %v308 = vmul.f32 %v297, %v299
    %v310 = vperm.slane %v130, 0
    %v312 = vadd.f32 %v301, %v310
    %v313 = vadd.f32 %v302, %v310
    %v314 = vadd.f32 %v303, %v310
    %v315 = vadd.f32 %v304, %v310
    %v316 = vadd.f32 %v305, %v310
    %v317 = vadd.f32 %v306, %v310
    %v318 = vadd.f32 %v307, %v310
    %v319 = vadd.f32 %v308, %v310
    %v320 = vadd.f32 %v312, %v313
    %v321 = vrot.slane %v320, 4
    %v322 = vadd.f32 %v320, %v321
    %v323 = vrot.slane %v322, 2
    %v324 = vadd.f32 %v322, %v323
    %v325 = vrot.slane %v324, 1
    %v326 = vadd.f32 %v324, %v325
    %v327 = vadd.f32 %v314, %v315
    %v328 = vrot.slane %v327, 4
    %v329 = vadd.f32 %v327, %v328
    %v330 = vrot.slane %v329, 2
    %v331 = vadd.f32 %v329, %v330
    %v332 = vrot.slane %v331, 1
    %v333 = vadd.f32 %v331, %v332
    %v334 = vadd.f32 %v316, %v317
    %v335 = vrot.slane %v334, 4
    %v336 = vadd.f32 %v334, %v335
    %v337 = vrot.slane %v336, 2
    %v338 = vadd.f32 %v336, %v337
    %v339 = vrot.slane %v338, 1
    %v340 = vadd.f32 %v338, %v339
    %v341 = vadd.f32 %v318, %v319
    %v342 = vrot.slane %v341, 4
    %v343 = vadd.f32 %v341, %v342
    %v344 = vrot.slane %v343, 2
    %v345 = vadd.f32 %v343, %v344
    %v346 = vrot.slane %v345, 1
    %v347 = vadd.f32 %v345, %v346
    %v348 = vlaneseq
    %v349 = vshrl.u32 %v348, 7
    %v350 = vadd.s32 %v349, 8
    %vm351 = vcmp.ge.s32.totalorder %v349, 1
    %vm352 = vcmp.ge.s32.totalorder %v350, 1
    %v353 = vrot.slane %v312, 7
    %v354 = vrot.slane %v313, 7
    %v355 = vrot.slane %v314, 7
    %v356 = vrot.slane %v315, 7
    %v357 = vrot.slane %v316, 7
    %v358 = vrot.slane %v317, 7
    %v359 = vrot.slane %v318, 7
    %v360 = vrot.slane %v319, 7
    %vm361 = vcmp.lt.s32.totalorder %v349, 1
    %v362 = vsel %vm361, %v359, %v360
    %v363 = vsel %vm361, %v358, %v359
    %v364 = vsel %vm361, %v357, %v358
    %v365 = vsel %vm361, %v356, %v357
    %v366 = vsel %vm361, %v355, %v356
    %v367 = vsel %vm361, %v354, %v355
    %v368 = vsel %vm361, %v353, %v354
    %v369 = vsel %vm361, %v360, %v353
    %v370 = vsel %vm351, 1, 0
    %v371 = vsel %vm352, 1, 0
    %vm372 = vcmp.eq.s32.totalorder %v370, 1
    %vm373 = vcmp.eq.s32.totalorder %v371, 1
    %v374 = vsel %vm372, %v369, 0.0
    %v375 = vsel %vm373, %v368, 0.0
    %v376 = vsel %vm372, %v367, 0.0
    %v377 = vsel %vm373, %v366, 0.0
    %v378 = vsel %vm372, %v365, 0.0
    %v379 = vsel %vm373, %v364, 0.0
    %v380 = vsel %vm372, %v363, 0.0
    %v381 = vsel %vm373, %v362, 0.0
    %v382 = vadd.f32 %v312, %v374
    %v383 = vadd.f32 %v313, %v375
    %v384 = vadd.f32 %v314, %v376
    %v385 = vadd.f32 %v315, %v377
    %v386 = vadd.f32 %v316, %v378
    %v387 = vadd.f32 %v317, %v379
    %v388 = vadd.f32 %v318, %v380
    %v389 = vadd.f32 %v319, %v381
    %vm390 = vcmp.ge.s32.totalorder %v349, 2
    %vm391 = vcmp.ge.s32.totalorder %v350, 2
    %v392 = vrot.slane %v382, 6
    %v393 = vrot.slane %v383, 6
    %v394 = vrot.slane %v384, 6
    %v395 = vrot.slane %v385, 6
    %v396 = vrot.slane %v386, 6
    %v397 = vrot.slane %v387, 6
    %v398 = vrot.slane %v388, 6
    %v399 = vrot.slane %v389, 6
    %vm400 = vcmp.lt.s32.totalorder %v349, 2
    %v401 = vsel %vm400, %v398, %v399
    %v402 = vsel %vm400, %v397, %v398
    %v403 = vsel %vm400, %v396, %v397
    %v404 = vsel %vm400, %v395, %v396
    %v405 = vsel %vm400, %v394, %v395
    %v406 = vsel %vm400, %v393, %v394
    %v407 = vsel %vm400, %v392, %v393
    %v408 = vsel %vm400, %v399, %v392
    %v409 = vsel %vm390, 1, 0
    %v410 = vsel %vm391, 1, 0
    %vm411 = vcmp.eq.s32.totalorder %v409, 1
    %vm412 = vcmp.eq.s32.totalorder %v410, 1
    %v413 = vsel %vm411, %v408, 0.0
    %v414 = vsel %vm412, %v407, 0.0
    %v415 = vsel %vm411, %v406, 0.0
    %v416 = vsel %vm412, %v405, 0.0
    %v417 = vsel %vm411, %v404, 0.0
    %v418 = vsel %vm412, %v403, 0.0
    %v419 = vsel %vm411, %v402, 0.0
    %v420 = vsel %vm412, %v401, 0.0
    %v421 = vadd.f32 %v382, %v413
    %v422 = vadd.f32 %v383, %v414
    %v423 = vadd.f32 %v384, %v415
    %v424 = vadd.f32 %v385, %v416
    %v425 = vadd.f32 %v386, %v417
    %v426 = vadd.f32 %v387, %v418
    %v427 = vadd.f32 %v388, %v419
    %v428 = vadd.f32 %v389, %v420
    %vm429 = vcmp.ge.s32.totalorder %v349, 4
    %vm430 = vcmp.ge.s32.totalorder %v350, 4
    %v431 = vrot.slane %v421, 4
    %v432 = vrot.slane %v422, 4
    %v433 = vrot.slane %v423, 4
    %v434 = vrot.slane %v424, 4
    %v435 = vrot.slane %v425, 4
    %v436 = vrot.slane %v426, 4
    %v437 = vrot.slane %v427, 4
    %v438 = vrot.slane %v428, 4
    %vm439 = vcmp.lt.s32.totalorder %v349, 4
    %v440 = vsel %vm439, %v437, %v438
    %v441 = vsel %vm439, %v436, %v437
    %v442 = vsel %vm439, %v435, %v436
    %v443 = vsel %vm439, %v434, %v435
    %v444 = vsel %vm439, %v433, %v434
    %v445 = vsel %vm439, %v432, %v433
    %v446 = vsel %vm439, %v431, %v432
    %v447 = vsel %vm439, %v438, %v431
    %v448 = vsel %vm429, 1, 0
    %v449 = vsel %vm430, 1, 0
    %vm450 = vcmp.eq.s32.totalorder %v448, 1
    %vm451 = vcmp.eq.s32.totalorder %v449, 1
    %v452 = vsel %vm450, %v447, 0.0
    %v453 = vsel %vm451, %v446, 0.0
    %v454 = vsel %vm450, %v445, 0.0
    %v455 = vsel %vm451, %v444, 0.0
    %v456 = vsel %vm450, %v443, 0.0
    %v457 = vsel %vm451, %v442, 0.0
    %v458 = vsel %vm450, %v441, 0.0
    %v459 = vsel %vm451, %v440, 0.0
    %v460 = vadd.f32 %v421, %v452
    %v461 = vadd.f32 %v422, %v453
    %v462 = vadd.f32 %v423, %v454
    %v463 = vadd.f32 %v424, %v455
    %v464 = vadd.f32 %v425, %v456
    %v465 = vadd.f32 %v426, %v457
    %v466 = vadd.f32 %v427, %v458
    %v467 = vadd.f32 %v428, %v459
    %vm468 = vcmp.ge.s32.totalorder %v349, 8
    %vm469 = vcmp.ge.s32.totalorder %v350, 8
    %v470 = vsel %vm468, 1, 0
    %v471 = vsel %vm469, 1, 0
    %vm472 = vcmp.eq.s32.totalorder %v470, 1
    %vm473 = vcmp.eq.s32.totalorder %v471, 1
    %v474 = vsel %vm472, %v467, 0.0
    %v475 = vsel %vm473, %v460, 0.0
    %v476 = vsel %vm472, %v461, 0.0
    %v477 = vsel %vm473, %v462, 0.0
    %v478 = vsel %vm472, %v463, 0.0
    %v479 = vsel %vm473, %v464, 0.0
    %v480 = vsel %vm472, %v465, 0.0
    %v481 = vsel %vm473, %v466, 0.0
    %v482 = vadd.f32 %v460, %v474
    %v483 = vadd.f32 %v461, %v475
    %v484 = vadd.f32 %v462, %v476
    %v485 = vadd.f32 %v463, %v477
    %v486 = vadd.f32 %v464, %v478
    %v487 = vadd.f32 %v465, %v479
    %v488 = vadd.f32 %v466, %v480
    %v489 = vadd.f32 %v467, %v481
    %vm490 = vcmp.ge.s32.totalorder %v349, 5
    %vm491 = vcmp.ge.s32.totalorder %v350, 5
    %v492 = vrot.slane %v482, 3
    %v493 = vrot.slane %v483, 3
    %v494 = vrot.slane %v484, 3
    %v495 = vrot.slane %v485, 3
    %v496 = vrot.slane %v486, 3
    %v497 = vrot.slane %v487, 3
    %v498 = vrot.slane %v488, 3
    %v499 = vrot.slane %v489, 3
    %vm500 = vcmp.lt.s32.totalorder %v349, 5
    %v501 = vsel %vm500, %v498, %v499
    %v502 = vsel %vm500, %v497, %v498
    %v503 = vsel %vm500, %v496, %v497
    %v504 = vsel %vm500, %v495, %v496
    %v505 = vsel %vm500, %v494, %v495
    %v506 = vsel %vm500, %v493, %v494
    %v507 = vsel %vm500, %v492, %v493
    %v508 = vsel %vm500, %v499, %v492
    %v509 = vsel %vm490, 1, 0
    %v510 = vsel %vm491, 1, 0
    %vm511 = vcmp.eq.s32.totalorder %v509, 1
    %vm512 = vcmp.eq.s32.totalorder %v510, 1
    %v513 = vsel %vm511, %v508, 0.0
    %v514 = vsel %vm512, %v507, 0.0
    %v515 = vsel %vm511, %v506, 0.0
    %v516 = vsel %vm512, %v505, 0.0
    %v517 = vsel %vm511, %v504, 0.0
    %v518 = vsel %vm512, %v503, 0.0
    %v519 = vsel %vm511, %v502, 0.0
    %v520 = vsel %vm512, %v501, 0.0
    %vm521 = vcmp.lt.s32.totalorder %v349, 15
    %vm522 = vcmp.lt.s32.totalorder %v350, 15
    %v523 = vrot.slane %v482, 1
    %v524 = vrot.slane %v483, 1
    %v525 = vrot.slane %v484, 1
    %v526 = vrot.slane %v485, 1
    %v527 = vrot.slane %v486, 1
    %v528 = vrot.slane %v487, 1
    %v529 = vrot.slane %v488, 1
    %v530 = vrot.slane %v489, 1
    %vm531 = vcmp.lt.s32.totalorder %v349, 7
    %v532 = vsel %vm531, %v529, %v530
    %v533 = vsel %vm531, %v528, %v529
    %v534 = vsel %vm531, %v527, %v528
    %v535 = vsel %vm531, %v526, %v527
    %v536 = vsel %vm531, %v525, %v526
    %v537 = vsel %vm531, %v524, %v525
    %v538 = vsel %vm531, %v523, %v524
    %v539 = vsel %vm531, %v530, %v523
    %v540 = vsel %vm521, 1, 0
    %v541 = vsel %vm522, 1, 0
    %vm542 = vcmp.eq.s32.totalorder %v540, 1
    %vm543 = vcmp.eq.s32.totalorder %v541, 1
    %v544 = vsel %vm542, %v538, %v326
    %v545 = vsel %vm543, %v537, %v326
    %v546 = vsel %vm542, %v536, %v333
    %v547 = vsel %vm543, %v535, %v333
    %v548 = vsel %vm542, %v534, %v340
    %v549 = vsel %vm543, %v533, %v340
    %v550 = vsel %vm542, %v532, %v347
    %v551 = vsel %vm543, %v539, %v347
    %vm552 = vcmp.lt.s32.totalorder %v349, 11
    %vm553 = vcmp.lt.s32.totalorder %v350, 11
    %v554 = vrot.slane %v482, 5
    %v555 = vrot.slane %v483, 5
    %v556 = vrot.slane %v484, 5
    %v557 = vrot.slane %v485, 5
    %v558 = vrot.slane %v486, 5
    %v559 = vrot.slane %v487, 5
    %v560 = vrot.slane %v488, 5
    %v561 = vrot.slane %v489, 5
    %vm562 = vcmp.lt.s32.totalorder %v349, 3
    %v563 = vsel %vm562, %v560, %v561
    %v564 = vsel %vm562, %v559, %v560
    %v565 = vsel %vm562, %v558, %v559
    %v566 = vsel %vm562, %v557, %v558
    %v567 = vsel %vm562, %v556, %v557
    %v568 = vsel %vm562, %v555, %v556
    %v569 = vsel %vm562, %v554, %v555
    %v570 = vsel %vm562, %v561, %v554
    %v571 = vsel %vm552, 1, 0
    %v572 = vsel %vm553, 1, 0
    %vm573 = vcmp.eq.s32.totalorder %v571, 1
    %vm574 = vcmp.eq.s32.totalorder %v572, 1
    %v575 = vsel %vm573, %v569, %v326
    %v576 = vsel %vm574, %v568, %v326
    %v577 = vsel %vm573, %v567, %v333
    %v578 = vsel %vm574, %v566, %v333
    %v579 = vsel %vm573, %v565, %v340
    %v580 = vsel %vm574, %v564, %v340
    %v581 = vsel %vm573, %v563, %v347
    %v582 = vsel %vm574, %v570, %v347
    %v583 = vsub.f32 %v326, %v544
    %v584 = vsub.f32 %v326, %v545
    %v585 = vsub.f32 %v333, %v546
    %v586 = vsub.f32 %v333, %v547
    %v587 = vsub.f32 %v340, %v548
    %v588 = vsub.f32 %v340, %v549
    %v589 = vsub.f32 %v347, %v550
    %v590 = vsub.f32 %v347, %v551
    %v591 = vsub.f32 %v482, %v513
    %v592 = vsub.f32 %v483, %v514
    %v593 = vsub.f32 %v484, %v515
    %v594 = vsub.f32 %v485, %v516
    %v595 = vsub.f32 %v486, %v517
    %v596 = vsub.f32 %v487, %v518
    %v597 = vsub.f32 %v488, %v519
    %v598 = vsub.f32 %v489, %v520
    %v599 = vrot.slane %v591, 7
    %v600 = vrot.slane %v592, 7
    %v601 = vrot.slane %v593, 7
    %v602 = vrot.slane %v594, 7
    %v603 = vrot.slane %v595, 7
    %v604 = vrot.slane %v596, 7
    %v605 = vrot.slane %v597, 7
    %v606 = vrot.slane %v598, 7
    %v607 = vsel %vm361, %v605, %v606
    %v608 = vsel %vm361, %v604, %v605
    %v609 = vsel %vm361, %v603, %v604
    %v610 = vsel %vm361, %v602, %v603
    %v611 = vsel %vm361, %v601, %v602
    %v612 = vsel %vm361, %v600, %v601
    %v613 = vsel %vm361, %v599, %v600
    %v614 = vsel %vm361, %v606, %v599
    %v615 = vsel %vm372, %v614, 0.0
    %v616 = vsel %vm373, %v613, 0.0
    %v617 = vsel %vm372, %v612, 0.0
    %v618 = vsel %vm373, %v611, 0.0
    %v619 = vsel %vm372, %v610, 0.0
    %v620 = vsel %vm373, %v609, 0.0
    %v621 = vsel %vm372, %v608, 0.0
    %v622 = vsel %vm373, %v607, 0.0
    %v623 = vsub.f32 %v575, %v482
    %v624 = vsub.f32 %v576, %v483
    %v625 = vsub.f32 %v577, %v484
    %v626 = vsub.f32 %v578, %v485
    %v627 = vsub.f32 %v579, %v486
    %v628 = vsub.f32 %v580, %v487
    %v629 = vsub.f32 %v581, %v488
    %v630 = vsub.f32 %v582, %v489
    %v631 = vsub.f32 %v513, %v615
    %v632 = vsub.f32 %v514, %v616
    %v633 = vsub.f32 %v515, %v617
    %v634 = vsub.f32 %v516, %v618
    %v635 = vsub.f32 %v517, %v619
    %v636 = vsub.f32 %v518, %v620
    %v637 = vsub.f32 %v519, %v621
    %v638 = vsub.f32 %v520, %v622
    %v639 = vsub.f32 %v583, %v623
    %v640 = vsub.f32 %v584, %v624
    %v641 = vsub.f32 %v585, %v625
    %v642 = vsub.f32 %v586, %v626
    %v643 = vsub.f32 %v587, %v627
    %v644 = vsub.f32 %v588, %v628
    %v645 = vsub.f32 %v589, %v629
    %v646 = vsub.f32 %v590, %v630
    %v647 = vadd.f32 %v513, %v583
    %v648 = vadd.f32 %v514, %v584
    %v649 = vadd.f32 %v515, %v585
    %v650 = vadd.f32 %v516, %v586
    %v651 = vadd.f32 %v517, %v587
    %v652 = vadd.f32 %v518, %v588
    %v653 = vadd.f32 %v519, %v589
    %v654 = vadd.f32 %v520, %v590
    %655 = vadd.xlane.f32.xlu0 %v647
    %v656 = vpop.xlane.xlu0 %655
    %657 = vadd.xlane.f32.xlu0 %v648
    %v658 = vpop.xlane.xlu0 %657
    %659 = vadd.xlane.f32.xlu0 %v649
    %v660 = vpop.xlane.xlu0 %659
    %661 = vadd.xlane.f32.xlu0 %v650
    %v662 = vpop.xlane.xlu0 %661
    %663 = vadd.xlane.f32.xlu0 %v651
    %v664 = vpop.xlane.xlu0 %663
    %665 = vadd.xlane.f32.xlu0 %v652
    %v666 = vpop.xlane.xlu0 %665
    %667 = vadd.xlane.f32.xlu0 %v653
    %v668 = vpop.xlane.xlu0 %667
    %669 = vadd.xlane.f32.xlu0 %v654
    %v670 = vpop.xlane.xlu0 %669
    %v671 = vmul.f32 %v656, 0.001953125
    %v672 = vmul.f32 %v658, 0.001953125
    %v673 = vmul.f32 %v660, 0.001953125
    %v674 = vmul.f32 %v662, 0.001953125
    %v675 = vmul.f32 %v664, 0.001953125
    %v676 = vmul.f32 %v666, 0.001953125
    %v677 = vmul.f32 %v668, 0.001953125
    %v678 = vmul.f32 %v670, 0.001953125
    %v679 = vsub.f32 %v631, %v671
    %v680 = vsub.f32 %v632, %v672
    %v681 = vsub.f32 %v633, %v673
    %v682 = vsub.f32 %v634, %v674
    %v683 = vsub.f32 %v635, %v675
    %v684 = vsub.f32 %v636, %v676
    %v685 = vsub.f32 %v637, %v677
    %v686 = vsub.f32 %v638, %v678
    %v687 = vsub.f32 %v615, %v671
    %v688 = vsub.f32 %v616, %v672
    %v689 = vsub.f32 %v617, %v673
    %v690 = vsub.f32 %v618, %v674
    %v691 = vsub.f32 %v619, %v675
    %v692 = vsub.f32 %v620, %v676
    %v693 = vsub.f32 %v621, %v677
    %v694 = vsub.f32 %v622, %v678
    %v695 = vsub.f32 %v623, %v671
    %v696 = vsub.f32 %v624, %v672
    %v697 = vsub.f32 %v625, %v673
    %v698 = vsub.f32 %v626, %v674
    %v699 = vsub.f32 %v627, %v675
    %v700 = vsub.f32 %v628, %v676
    %v701 = vsub.f32 %v629, %v677
    %v702 = vsub.f32 %v630, %v678
    %v703 = vsub.f32 %v639, %v671
    %v704 = vsub.f32 %v640, %v672
    %v705 = vsub.f32 %v641, %v673
    %v706 = vsub.f32 %v642, %v674
    %v707 = vsub.f32 %v643, %v675
    %v708 = vsub.f32 %v644, %v676
    %v709 = vsub.f32 %v645, %v677
    %v710 = vsub.f32 %v646, %v678
    %v711 = vmul.f32 %v679, %v679
    %v712 = vmul.f32 %v680, %v680
    %v713 = vmul.f32 %v681, %v681
    %v714 = vmul.f32 %v682, %v682
    %v715 = vmul.f32 %v683, %v683
    %v716 = vmul.f32 %v684, %v684
    %v717 = vmul.f32 %v685, %v685
    %v718 = vmul.f32 %v686, %v686
    %v719 = vmul.f32 %v687, %v687
    %v720 = vmul.f32 %v688, %v688
    %v721 = vmul.f32 %v689, %v689
    %v722 = vmul.f32 %v690, %v690
    %v723 = vmul.f32 %v691, %v691
    %v724 = vmul.f32 %v692, %v692
    %v725 = vmul.f32 %v693, %v693
    %v726 = vmul.f32 %v694, %v694
    %v727 = vadd.f32 %v711, %v719
    %v728 = vadd.f32 %v712, %v720
    %v729 = vadd.f32 %v713, %v721
    %v730 = vadd.f32 %v714, %v722
    %v731 = vadd.f32 %v715, %v723
    %v732 = vadd.f32 %v716, %v724
    %v733 = vadd.f32 %v717, %v725
    %v734 = vadd.f32 %v718, %v726
    %v735 = vmul.f32 %v695, %v695
    %v736 = vmul.f32 %v696, %v696
    %v737 = vmul.f32 %v697, %v697
    %v738 = vmul.f32 %v698, %v698
    %v739 = vmul.f32 %v699, %v699
    %v740 = vmul.f32 %v700, %v700
    %v741 = vmul.f32 %v701, %v701
    %v742 = vmul.f32 %v702, %v702
    %v743 = vadd.f32 %v727, %v735
    %v744 = vadd.f32 %v728, %v736
    %v745 = vadd.f32 %v729, %v737
    %v746 = vadd.f32 %v730, %v738
    %v747 = vadd.f32 %v731, %v739
    %v748 = vadd.f32 %v732, %v740
    %v749 = vadd.f32 %v733, %v741
    %v750 = vadd.f32 %v734, %v742
    %v751 = vmul.f32 %v703, %v703
    %v752 = vmul.f32 %v704, %v704
    %v753 = vmul.f32 %v705, %v705
    %v754 = vmul.f32 %v706, %v706
    %v755 = vmul.f32 %v707, %v707
    %v756 = vmul.f32 %v708, %v708
    %v757 = vmul.f32 %v709, %v709
    %v758 = vmul.f32 %v710, %v710
    %v759 = vadd.f32 %v743, %v751
    %v760 = vadd.f32 %v744, %v752
    %v761 = vadd.f32 %v745, %v753
    %v762 = vadd.f32 %v746, %v754
    %v763 = vadd.f32 %v747, %v755
    %v764 = vadd.f32 %v748, %v756
    %v765 = vadd.f32 %v749, %v757
    %v766 = vadd.f32 %v750, %v758
    %767 = vadd.xlane.f32.xlu0 %v759
    %v768 = vpop.xlane.xlu0 %767
    %769 = vadd.xlane.f32.xlu0 %v760
    %v770 = vpop.xlane.xlu0 %769
    %771 = vadd.xlane.f32.xlu0 %v761
    %v772 = vpop.xlane.xlu0 %771
    %773 = vadd.xlane.f32.xlu0 %v762
    %v774 = vpop.xlane.xlu0 %773
    %775 = vadd.xlane.f32.xlu0 %v763
    %v776 = vpop.xlane.xlu0 %775
    %777 = vadd.xlane.f32.xlu0 %v764
    %v778 = vpop.xlane.xlu0 %777
    %779 = vadd.xlane.f32.xlu0 %v765
    %v780 = vpop.xlane.xlu0 %779
    %781 = vadd.xlane.f32.xlu0 %v766
    %v782 = vpop.xlane.xlu0 %781
    %v783 = vmul.f32 %v768, 0.001953125
    %v784 = vmul.f32 %v770, 0.001953125
    %v785 = vmul.f32 %v772, 0.001953125
    %v786 = vmul.f32 %v774, 0.001953125
    %v787 = vmul.f32 %v776, 0.001953125
    %v788 = vmul.f32 %v778, 0.001953125
    %v789 = vmul.f32 %v780, 0.001953125
    %v790 = vmul.f32 %v782, 0.001953125
    %v791 = vadd.f32 %v783, 1e-06
    %v792 = vadd.f32 %v784, 1e-06
    %v793 = vadd.f32 %v785, 1e-06
    %v794 = vadd.f32 %v786, 1e-06
    %v795 = vadd.f32 %v787, 1e-06
    %v796 = vadd.f32 %v788, 1e-06
    %v797 = vadd.f32 %v789, 1e-06
    %v798 = vadd.f32 %v790, 1e-06
    %v799 = vrsqrt.pop %v791
    %v800 = vmul.f32 %v799, %v791
    %v801 = vmul.f32 %v800, %v799
    %v802 = vmul.f32 0.5, %v801
    %v803 = vsub.f32 1.5, %v802
    %v804 = vmul.f32 %v799, %v803
    %vm805 = vweird.f32 %v791
    %vm806 = vweird.f32 %v799
    %vm807 = vmor %vm805, %vm806
    %v808 = vsel %vm807, %v799, %v804
    %v809 = vrsqrt.pop %v792
    %v810 = vmul.f32 %v809, %v792
    %v811 = vmul.f32 %v810, %v809
    %v812 = vmul.f32 0.5, %v811
    %v813 = vsub.f32 1.5, %v812
    %v814 = vmul.f32 %v809, %v813
    %vm815 = vweird.f32 %v792
    %vm816 = vweird.f32 %v809
    %vm817 = vmor %vm815, %vm816
    %v818 = vsel %vm817, %v809, %v814
    %v819 = vrsqrt.pop %v793
    %v820 = vmul.f32 %v819, %v793
    %v821 = vmul.f32 %v820, %v819
    %v822 = vmul.f32 0.5, %v821
    %v823 = vsub.f32 1.5, %v822
    %v824 = vmul.f32 %v819, %v823
    %vm825 = vweird.f32 %v793
    %vm826 = vweird.f32 %v819
    %vm827 = vmor %vm825, %vm826
    %v828 = vsel %vm827, %v819, %v824
    %v829 = vrsqrt.pop %v794
    %v830 = vmul.f32 %v829, %v794
    %v831 = vmul.f32 %v830, %v829
    %v832 = vmul.f32 0.5, %v831
    %v833 = vsub.f32 1.5, %v832
    %v834 = vmul.f32 %v829, %v833
    %vm835 = vweird.f32 %v794
    %vm836 = vweird.f32 %v829
    %vm837 = vmor %vm835, %vm836
    %v838 = vsel %vm837, %v829, %v834
    %v839 = vrsqrt.pop %v795
    %v840 = vmul.f32 %v839, %v795
    %v841 = vmul.f32 %v840, %v839
    %v842 = vmul.f32 0.5, %v841
    %v843 = vsub.f32 1.5, %v842
    %v844 = vmul.f32 %v839, %v843
    %vm845 = vweird.f32 %v795
    %vm846 = vweird.f32 %v839
    %vm847 = vmor %vm845, %vm846
    %v848 = vsel %vm847, %v839, %v844
    %v849 = vrsqrt.pop %v796
    %v850 = vmul.f32 %v849, %v796
    %v851 = vmul.f32 %v850, %v849
    %v852 = vmul.f32 0.5, %v851
    %v853 = vsub.f32 1.5, %v852
    %v854 = vmul.f32 %v849, %v853
    %vm855 = vweird.f32 %v796
    %vm856 = vweird.f32 %v849
    %vm857 = vmor %vm855, %vm856
    %v858 = vsel %vm857, %v849, %v854
    %v859 = vrsqrt.pop %v797
    %v860 = vmul.f32 %v859, %v797
    %v861 = vmul.f32 %v860, %v859
    %v862 = vmul.f32 0.5, %v861
    %v863 = vsub.f32 1.5, %v862
    %v864 = vmul.f32 %v859, %v863
    %vm865 = vweird.f32 %v797
    %vm866 = vweird.f32 %v859
    %vm867 = vmor %vm865, %vm866
    %v868 = vsel %vm867, %v859, %v864
    %v869 = vrsqrt.pop %v798
    %v870 = vmul.f32 %v869, %v798
    %v871 = vmul.f32 %v870, %v869
    %v872 = vmul.f32 0.5, %v871
    %v873 = vsub.f32 1.5, %v872
    %v874 = vmul.f32 %v869, %v873
    %vm875 = vweird.f32 %v798
    %vm876 = vweird.f32 %v869
    %vm877 = vmor %vm875, %vm876
    %v878 = vsel %vm877, %v869, %v874
    %v879 = vld [vmem:[#allocation7] sm:$0xf]
    %v880 = vld [vmem:[#allocation8] sm:$0xf]
    %v881 = vmul.f32 %v679, %v808
    %v882 = vmul.f32 %v680, %v818
    %v883 = vmul.f32 %v681, %v828
    %v884 = vmul.f32 %v682, %v838
    %v885 = vmul.f32 %v683, %v848
    %v886 = vmul.f32 %v684, %v858
    %v887 = vmul.f32 %v685, %v868
    %v888 = vmul.f32 %v686, %v878
    %v889 = vperm.slane %v879, 0
    %v890 = vmul.f32 %v881, %v889
    %v891 = vmul.f32 %v882, %v889
    %v892 = vmul.f32 %v883, %v889
    %v893 = vmul.f32 %v884, %v889
    %v894 = vmul.f32 %v885, %v889
    %v895 = vmul.f32 %v886, %v889
    %v896 = vmul.f32 %v887, %v889
    %v897 = vmul.f32 %v888, %v889
    %v898 = vperm.slane %v880, 0
    %v899 = vadd.f32 %v890, %v898
    %v900 = vadd.f32 %v891, %v898
    %v901 = vadd.f32 %v892, %v898
    %v902 = vadd.f32 %v893, %v898
    %v903 = vadd.f32 %v894, %v898
    %v904 = vadd.f32 %v895, %v898
    %v905 = vadd.f32 %v896, %v898
    %v906 = vadd.f32 %v897, %v898
    %v907 = vmul.f32 %v687, %v808
    %v908 = vmul.f32 %v688, %v818
    %v909 = vmul.f32 %v689, %v828
    %v910 = vmul.f32 %v690, %v838
    %v911 = vmul.f32 %v691, %v848
    %v912 = vmul.f32 %v692, %v858
    %v913 = vmul.f32 %v693, %v868
    %v914 = vmul.f32 %v694, %v878
    %v915 = vperm.slane %v879, 1
    %v916 = vmul.f32 %v907, %v915
    %v917 = vmul.f32 %v908, %v915
    %v918 = vmul.f32 %v909, %v915
    %v919 = vmul.f32 %v910, %v915
    %v920 = vmul.f32 %v911, %v915
    %v921 = vmul.f32 %v912, %v915
    %v922 = vmul.f32 %v913, %v915
    %v923 = vmul.f32 %v914, %v915
    %v924 = vperm.slane %v880, 1
    %v925 = vadd.f32 %v916, %v924
    %v926 = vadd.f32 %v917, %v924
    %v927 = vadd.f32 %v918, %v924
    %v928 = vadd.f32 %v919, %v924
    %v929 = vadd.f32 %v920, %v924
    %v930 = vadd.f32 %v921, %v924
    %v931 = vadd.f32 %v922, %v924
    %v932 = vadd.f32 %v923, %v924
    %v933 = vmul.f32 %v695, %v808
    %v934 = vmul.f32 %v696, %v818
    %v935 = vmul.f32 %v697, %v828
    %v936 = vmul.f32 %v698, %v838
    %v937 = vmul.f32 %v699, %v848
    %v938 = vmul.f32 %v700, %v858
    %v939 = vmul.f32 %v701, %v868
    %v940 = vmul.f32 %v702, %v878
    %v941 = vperm.slane %v879, 2
    %v942 = vmul.f32 %v933, %v941
    %v943 = vmul.f32 %v934, %v941
    %v944 = vmul.f32 %v935, %v941
    %v945 = vmul.f32 %v936, %v941
    %v946 = vmul.f32 %v937, %v941
    %v947 = vmul.f32 %v938, %v941
    %v948 = vmul.f32 %v939, %v941
    %v949 = vmul.f32 %v940, %v941
    %v950 = vperm.slane %v880, 2
    %v951 = vadd.f32 %v942, %v950
    %v952 = vadd.f32 %v943, %v950
    %v953 = vadd.f32 %v944, %v950
    %v954 = vadd.f32 %v945, %v950
    %v955 = vadd.f32 %v946, %v950
    %v956 = vadd.f32 %v947, %v950
    %v957 = vadd.f32 %v948, %v950
    %v958 = vadd.f32 %v949, %v950
    %v959 = vmul.f32 %v703, %v808
    %v960 = vmul.f32 %v704, %v818
    %v961 = vmul.f32 %v705, %v828
    %v962 = vmul.f32 %v706, %v838
    %v963 = vmul.f32 %v707, %v848
    %v964 = vmul.f32 %v708, %v858
    %v965 = vmul.f32 %v709, %v868
    %v966 = vmul.f32 %v710, %v878
    %v967 = vperm.slane %v879, 3
    %v968 = vmul.f32 %v959, %v967
    %v969 = vmul.f32 %v960, %v967
    %v970 = vmul.f32 %v961, %v967
    %v971 = vmul.f32 %v962, %v967
    %v972 = vmul.f32 %v963, %v967
    %v973 = vmul.f32 %v964, %v967
    %v974 = vmul.f32 %v965, %v967
    %v975 = vmul.f32 %v966, %v967
    %v976 = vperm.slane %v880, 3
    %v977 = vadd.f32 %v968, %v976
    %v978 = vadd.f32 %v969, %v976
    %v979 = vadd.f32 %v970, %v976
    %v980 = vadd.f32 %v971, %v976
    %v981 = vadd.f32 %v972, %v976
    %v982 = vadd.f32 %v973, %v976
    %v983 = vadd.f32 %v974, %v976
    %v984 = vadd.f32 %v975, %v976
    %v985 = vld [vmem:[#allocation10] sm:$0xff]
    %v986 = vld [vmem:[#allocation10 + $0x8] sm:$0xff]
    %v987 = vld [vmem:[#allocation10 + $0x10] sm:$0xff]
    %v988 = vld [vmem:[#allocation10 + $0x18] sm:$0xff]
    %v989 = vld [vmem:[#allocation10 + $0x20] sm:$0xff]
    %v990 = vld [vmem:[#allocation10 + $0x28] sm:$0xff]
    %v991 = vld [vmem:[#allocation10 + $0x30] sm:$0xff]
    %v992 = vld [vmem:[#allocation10 + $0x38] sm:$0xff]
    %v993 = vld [vmem:[#allocation10 + $0x40] sm:$0xff]
    %v994 = vld [vmem:[#allocation10 + $0x48] sm:$0xff]
    %v995 = vld [vmem:[#allocation10 + $0x50] sm:$0xff]
    %v996 = vld [vmem:[#allocation10 + $0x58] sm:$0xff]
    %v997 = vld [vmem:[#allocation10 + $0x60] sm:$0xff]
    %v998 = vld [vmem:[#allocation10 + $0x68] sm:$0xff]
    %v999 = vld [vmem:[#allocation10 + $0x70] sm:$0xff]
    %v1000 = vld [vmem:[#allocation10 + $0x78] sm:$0xff]
    %v1001 = vld [vmem:[#allocation10 + $0x80] sm:$0xff]
    %v1002 = vld [vmem:[#allocation10 + $0x88] sm:$0xff]
    %v1003 = vld [vmem:[#allocation10 + $0x90] sm:$0xff]
    %v1004 = vld [vmem:[#allocation10 + $0x98] sm:$0xff]
    %v1005 = vld [vmem:[#allocation10 + $0xa0] sm:$0xff]
    %v1006 = vld [vmem:[#allocation10 + $0xa8] sm:$0xff]
    %v1007 = vld [vmem:[#allocation10 + $0xb0] sm:$0xff]
    %v1008 = vld [vmem:[#allocation10 + $0xb8] sm:$0xff]
    %v1009 = vld [vmem:[#allocation10 + $0xc0] sm:$0xff]
    %v1010 = vld [vmem:[#allocation10 + $0xc8] sm:$0xff]
    %v1011 = vld [vmem:[#allocation10 + $0xd0] sm:$0xff]
    %v1012 = vld [vmem:[#allocation10 + $0xd8] sm:$0xff]
    %v1013 = vld [vmem:[#allocation10 + $0xe0] sm:$0xff]
    %v1014 = vld [vmem:[#allocation10 + $0xe8] sm:$0xff]
    %v1015 = vld [vmem:[#allocation10 + $0xf0] sm:$0xff]
    %v1016 = vld [vmem:[#allocation10 + $0xf8] sm:$0xff]
    %v1017 = vld [vmem:[#allocation10 + $0x100] sm:$0xff]
    %v1018 = vld [vmem:[#allocation10 + $0x108] sm:$0xff]
    %v1019 = vld [vmem:[#allocation10 + $0x110] sm:$0xff]
    %v1020 = vld [vmem:[#allocation10 + $0x118] sm:$0xff]
    %v1021 = vld [vmem:[#allocation10 + $0x120] sm:$0xff]
    %v1022 = vld [vmem:[#allocation10 + $0x128] sm:$0xff]
    %v1023 = vld [vmem:[#allocation10 + $0x130] sm:$0xff]
    %v1024 = vld [vmem:[#allocation10 + $0x138] sm:$0xff]
    %v1025 = vld [vmem:[#allocation10 + $0x140] sm:$0xff]
    %v1026 = vld [vmem:[#allocation10 + $0x148] sm:$0xff]
    %v1027 = vld [vmem:[#allocation10 + $0x150] sm:$0xff]
    %v1028 = vld [vmem:[#allocation10 + $0x158] sm:$0xff]
    %v1029 = vld [vmem:[#allocation10 + $0x160] sm:$0xff]
    %v1030 = vld [vmem:[#allocation10 + $0x168] sm:$0xff]
    %v1031 = vld [vmem:[#allocation10 + $0x170] sm:$0xff]
    %v1032 = vld [vmem:[#allocation10 + $0x178] sm:$0xff]
    %v1033 = vld [vmem:[#allocation10 + $0x180] sm:$0xff]
    %v1034 = vld [vmem:[#allocation10 + $0x188] sm:$0xff]
    %v1035 = vld [vmem:[#allocation10 + $0x190] sm:$0xff]
    %v1036 = vld [vmem:[#allocation10 + $0x198] sm:$0xff]
    %v1037 = vld [vmem:[#allocation10 + $0x1a0] sm:$0xff]
    %v1038 = vld [vmem:[#allocation10 + $0x1a8] sm:$0xff]
    %v1039 = vld [vmem:[#allocation10 + $0x1b0] sm:$0xff]
    %v1040 = vld [vmem:[#allocation10 + $0x1b8] sm:$0xff]
    %v1041 = vld [vmem:[#allocation10 + $0x1c0] sm:$0xff]
    %v1042 = vld [vmem:[#allocation10 + $0x1c8] sm:$0xff]
    %v1043 = vld [vmem:[#allocation10 + $0x1d0] sm:$0xff]
    %v1044 = vld [vmem:[#allocation10 + $0x1d8] sm:$0xff]
    %v1045 = vld [vmem:[#allocation10 + $0x1e0] sm:$0xff]
    %v1046 = vld [vmem:[#allocation10 + $0x1e8] sm:$0xff]
    %v1047 = vld [vmem:[#allocation10 + $0x1f0] sm:$0xff]
    %v1048 = vld [vmem:[#allocation10 + $0x1f8] sm:$0xff]
    %v1049 = vld [vmem:[#allocation10 + $0x200] sm:$0xff]
    %v1050 = vld [vmem:[#allocation10 + $0x208] sm:$0xff]
    %v1051 = vld [vmem:[#allocation10 + $0x210] sm:$0xff]
    %v1052 = vld [vmem:[#allocation10 + $0x218] sm:$0xff]
    %v1053 = vld [vmem:[#allocation10 + $0x220] sm:$0xff]
    %v1054 = vld [vmem:[#allocation10 + $0x228] sm:$0xff]
    %v1055 = vld [vmem:[#allocation10 + $0x230] sm:$0xff]
    %v1056 = vld [vmem:[#allocation10 + $0x238] sm:$0xff]
    %v1057 = vld [vmem:[#allocation10 + $0x240] sm:$0xff]
    %v1058 = vld [vmem:[#allocation10 + $0x248] sm:$0xff]
    %v1059 = vld [vmem:[#allocation10 + $0x250] sm:$0xff]
    %v1060 = vld [vmem:[#allocation10 + $0x258] sm:$0xff]
    %v1061 = vld [vmem:[#allocation10 + $0x260] sm:$0xff]
    %v1062 = vld [vmem:[#allocation10 + $0x268] sm:$0xff]
    %v1063 = vld [vmem:[#allocation10 + $0x270] sm:$0xff]
    %v1064 = vld [vmem:[#allocation10 + $0x278] sm:$0xff]
    %v1065 = vld [vmem:[#allocation10 + $0x280] sm:$0xff]
    %v1066 = vld [vmem:[#allocation10 + $0x288] sm:$0xff]
    %v1067 = vld [vmem:[#allocation10 + $0x290] sm:$0xff]
    %v1068 = vld [vmem:[#allocation10 + $0x298] sm:$0xff]
    %v1069 = vld [vmem:[#allocation10 + $0x2a0] sm:$0xff]
    %v1070 = vld [vmem:[#allocation10 + $0x2a8] sm:$0xff]
    %v1071 = vld [vmem:[#allocation10 + $0x2b0] sm:$0xff]
    %v1072 = vld [vmem:[#allocation10 + $0x2b8] sm:$0xff]
    %v1073 = vld [vmem:[#allocation10 + $0x2c0] sm:$0xff]
    %v1074 = vld [vmem:[#allocation10 + $0x2c8] sm:$0xff]
    %v1075 = vld [vmem:[#allocation10 + $0x2d0] sm:$0xff]
    %v1076 = vld [vmem:[#allocation10 + $0x2d8] sm:$0xff]
    %v1077 = vld [vmem:[#allocation10 + $0x2e0] sm:$0xff]
    %v1078 = vld [vmem:[#allocation10 + $0x2e8] sm:$0xff]
    %v1079 = vld [vmem:[#allocation10 + $0x2f0] sm:$0xff]
    %v1080 = vld [vmem:[#allocation10 + $0x2f8] sm:$0xff]
    %v1081 = vld [vmem:[#allocation10 + $0x300] sm:$0xff]
    %v1082 = vld [vmem:[#allocation10 + $0x308] sm:$0xff]
    %v1083 = vld [vmem:[#allocation10 + $0x310] sm:$0xff]
    %v1084 = vld [vmem:[#allocation10 + $0x318] sm:$0xff]
    %v1085 = vld [vmem:[#allocation10 + $0x320] sm:$0xff]
    %v1086 = vld [vmem:[#allocation10 + $0x328] sm:$0xff]
    %v1087 = vld [vmem:[#allocation10 + $0x330] sm:$0xff]
    %v1088 = vld [vmem:[#allocation10 + $0x338] sm:$0xff]
    %v1089 = vld [vmem:[#allocation10 + $0x340] sm:$0xff]
    %v1090 = vld [vmem:[#allocation10 + $0x348] sm:$0xff]
    %v1091 = vld [vmem:[#allocation10 + $0x350] sm:$0xff]
    %v1092 = vld [vmem:[#allocation10 + $0x358] sm:$0xff]
    %v1093 = vld [vmem:[#allocation10 + $0x360] sm:$0xff]
    %v1094 = vld [vmem:[#allocation10 + $0x368] sm:$0xff]
    %v1095 = vld [vmem:[#allocation10 + $0x370] sm:$0xff]
    %v1096 = vld [vmem:[#allocation10 + $0x378] sm:$0xff]
    %v1097 = vld [vmem:[#allocation10 + $0x380] sm:$0xff]
    %v1098 = vld [vmem:[#allocation10 + $0x388] sm:$0xff]
    %v1099 = vld [vmem:[#allocation10 + $0x390] sm:$0xff]
    %v1100 = vld [vmem:[#allocation10 + $0x398] sm:$0xff]
    %v1101 = vld [vmem:[#allocation10 + $0x3a0] sm:$0xff]
    %v1102 = vld [vmem:[#allocation10 + $0x3a8] sm:$0xff]
    %v1103 = vld [vmem:[#allocation10 + $0x3b0] sm:$0xff]
    %v1104 = vld [vmem:[#allocation10 + $0x3b8] sm:$0xff]
    %v1105 = vld [vmem:[#allocation10 + $0x3c0] sm:$0xff]
    %v1106 = vld [vmem:[#allocation10 + $0x3c8] sm:$0xff]
    %v1107 = vld [vmem:[#allocation10 + $0x3d0] sm:$0xff]
    %v1108 = vld [vmem:[#allocation10 + $0x3d8] sm:$0xff]
    %v1109 = vld [vmem:[#allocation10 + $0x3e0] sm:$0xff]
    %v1110 = vld [vmem:[#allocation10 + $0x3e8] sm:$0xff]
    %v1111 = vld [vmem:[#allocation10 + $0x3f0] sm:$0xff]
    %v1112 = vld [vmem:[#allocation10 + $0x3f8] sm:$0xff]
    %v1113 = vld [vmem:[#allocation10 + $0x400] sm:$0xff]
    %v1114 = vld [vmem:[#allocation10 + $0x408] sm:$0xff]
    %v1115 = vld [vmem:[#allocation10 + $0x410] sm:$0xff]
    %v1116 = vld [vmem:[#allocation10 + $0x418] sm:$0xff]
    %v1117 = vld [vmem:[#allocation10 + $0x420] sm:$0xff]
    %v1118 = vld [vmem:[#allocation10 + $0x428] sm:$0xff]
    %v1119 = vld [vmem:[#allocation10 + $0x430] sm:$0xff]
    %v1120 = vld [vmem:[#allocation10 + $0x438] sm:$0xff]
    %v1121 = vld [vmem:[#allocation10 + $0x440] sm:$0xff]
    %v1122 = vld [vmem:[#allocation10 + $0x448] sm:$0xff]
    %v1123 = vld [vmem:[#allocation10 + $0x450] sm:$0xff]
    %v1124 = vld [vmem:[#allocation10 + $0x458] sm:$0xff]
    %v1125 = vld [vmem:[#allocation10 + $0x460] sm:$0xff]
    %v1126 = vld [vmem:[#allocation10 + $0x468] sm:$0xff]
    %v1127 = vld [vmem:[#allocation10 + $0x470] sm:$0xff]
    %v1128 = vld [vmem:[#allocation10 + $0x478] sm:$0xff]
    %v1129 = vld [vmem:[#allocation10 + $0x480] sm:$0xff]
    %v1130 = vld [vmem:[#allocation10 + $0x488] sm:$0xff]
    %v1131 = vld [vmem:[#allocation10 + $0x490] sm:$0xff]
    %v1132 = vld [vmem:[#allocation10 + $0x498] sm:$0xff]
    %v1133 = vld [vmem:[#allocation10 + $0x4a0] sm:$0xff]
    %v1134 = vld [vmem:[#allocation10 + $0x4a8] sm:$0xff]
    %v1135 = vld [vmem:[#allocation10 + $0x4b0] sm:$0xff]
    %v1136 = vld [vmem:[#allocation10 + $0x4b8] sm:$0xff]
    %v1137 = vld [vmem:[#allocation10 + $0x4c0] sm:$0xff]
    %v1138 = vld [vmem:[#allocation10 + $0x4c8] sm:$0xff]
    %v1139 = vld [vmem:[#allocation10 + $0x4d0] sm:$0xff]
    %v1140 = vld [vmem:[#allocation10 + $0x4d8] sm:$0xff]
    %v1141 = vld [vmem:[#allocation10 + $0x4e0] sm:$0xff]
    %v1142 = vld [vmem:[#allocation10 + $0x4e8] sm:$0xff]
    %v1143 = vld [vmem:[#allocation10 + $0x4f0] sm:$0xff]
    %v1144 = vld [vmem:[#allocation10 + $0x4f8] sm:$0xff]
    %v1145 = vld [vmem:[%s6] sm:$0x3]
    %v1147 = vperm.slane %v1145, 0
    %v1148 = vperm.slane %v1145, 1
    %1151 = vmatpush.msra.mxu0 %v1015
    %1152 = vmatpush.msra.mxu0 %v1013
    %1153 = vmatpush.msra.mxu0 %v1011
    %1154 = vmatpush.msra.mxu0 %v1009
    %1155 = vmatpush.msra.mxu0 %v1007
    %1156 = vmatpush.msra.mxu0 %v1005
    %1157 = vmatpush.msra.mxu0 %v1003
    %1158 = vmatpush.msra.mxu0 %v1001
    %1159 = vmatpush.msra.mxu0 %v999
    %1160 = vmatpush.msra.mxu0 %v997
    %1161 = vmatpush.msra.mxu0 %v995
    %1162 = vmatpush.msra.mxu0 %v993
    %1163 = vmatpush.msra.mxu0 %v991
    %1164 = vmatpush.msra.mxu0 %v989
    %1165 = vmatpush.msra.mxu0 %v987
    %1166 = vmatpush.msra.mxu0 %v985
    %1167 = vmatmul.f32.gmra.mxu0 %v899
    %v1168 = vpop.f32.mrf.mxu0
    %v1169 = vadd.f32 %v1147, %v1168
    %1170 = vmatmul.f32.gmra.mxu0 %v900
    %v1171 = vpop.f32.mrf.mxu0
    %v1172 = vadd.f32 %v1147, %v1171
    %1173 = vmatmul.f32.gmra.mxu0 %v901
    %v1174 = vpop.f32.mrf.mxu0
    %v1175 = vadd.f32 %v1147, %v1174
    %1176 = vmatmul.f32.gmra.mxu0 %v902
    %v1177 = vpop.f32.mrf.mxu0
    %v1178 = vadd.f32 %v1147, %v1177
    %1179 = vmatmul.f32.gmra.mxu0 %v903
    %v1180 = vpop.f32.mrf.mxu0
    %v1181 = vadd.f32 %v1147, %v1180
    %1182 = vmatmul.f32.gmra.mxu0 %v904
    %v1183 = vpop.f32.mrf.mxu0
    %v1184 = vadd.f32 %v1147, %v1183
    %1185 = vmatmul.f32.gmra.mxu0 %v905
    %v1186 = vpop.f32.mrf.mxu0
    %v1187 = vadd.f32 %v1147, %v1186
    %1188 = vmatmul.f32.gmra.mxu0 %v906
    %v1189 = vpop.f32.mrf.mxu0
    %v1190 = vadd.f32 %v1147, %v1189
    %1191 = vdwg.mxu0
    %1192 = vmatpush.msra.mxu0 %v1047
    %1193 = vmatpush.msra.mxu0 %v1045
    %1194 = vmatpush.msra.mxu0 %v1043
    %1195 = vmatpush.msra.mxu0 %v1041
    %1196 = vmatpush.msra.mxu0 %v1039
    %1197 = vmatpush.msra.mxu0 %v1037
    %1198 = vmatpush.msra.mxu0 %v1035
    %1199 = vmatpush.msra.mxu0 %v1033
    %1200 = vmatpush.msra.mxu0 %v1031
    %1201 = vmatpush.msra.mxu0 %v1029
    %1202 = vmatpush.msra.mxu0 %v1027
    %1203 = vmatpush.msra.mxu0 %v1025
    %1204 = vmatpush.msra.mxu0 %v1023
    %1205 = vmatpush.msra.mxu0 %v1021
    %1206 = vmatpush.msra.mxu0 %v1019
    %1207 = vmatpush.msra.mxu0 %v1017
    %1208 = vmatmul.f32.gmra.mxu0 %v925
    %v1209 = vpop.f32.mrf.mxu0
    %v1210 = vadd.f32 %v1169, %v1209
    %1211 = vmatmul.f32.gmra.mxu0 %v926
    %v1212 = vpop.f32.mrf.mxu0
    %v1213 = vadd.f32 %v1172, %v1212
    %1214 = vmatmul.f32.gmra.mxu0 %v927
    %v1215 = vpop.f32.mrf.mxu0
    %v1216 = vadd.f32 %v1175, %v1215
    %1217 = vmatmul.f32.gmra.mxu0 %v928
    %v1218 = vpop.f32.mrf.mxu0
    %v1219 = vadd.f32 %v1178, %v1218
    %1220 = vmatmul.f32.gmra.mxu0 %v929
    %v1221 = vpop.f32.mrf.mxu0
    %v1222 = vadd.f32 %v1181, %v1221
    %1223 = vmatmul.f32.gmra.mxu0 %v930
    %v1224 = vpop.f32.mrf.mxu0
    %v1225 = vadd.f32 %v1184, %v1224
    %1226 = vmatmul.f32.gmra.mxu0 %v931
    %v1227 = vpop.f32.mrf.mxu0
    %v1228 = vadd.f32 %v1187, %v1227
    %1229 = vmatmul.f32.gmra.mxu0 %v932
    %v1230 = vpop.f32.mrf.mxu0
    %v1231 = vadd.f32 %v1190, %v1230
    %1232 = vdwg.mxu0
    %1233 = vmatpush.msra.mxu0 %v1079
    %1234 = vmatpush.msra.mxu0 %v1077
    %1235 = vmatpush.msra.mxu0 %v1075
    %1236 = vmatpush.msra.mxu0 %v1073
    %1237 = vmatpush.msra.mxu0 %v1071
    %1238 = vmatpush.msra.mxu0 %v1069
    %1239 = vmatpush.msra.mxu0 %v1067
    %1240 = vmatpush.msra.mxu0 %v1065
    %1241 = vmatpush.msra.mxu0 %v1063
    %1242 = vmatpush.msra.mxu0 %v1061
    %1243 = vmatpush.msra.mxu0 %v1059
    %1244 = vmatpush.msra.mxu0 %v1057
    %1245 = vmatpush.msra.mxu0 %v1055
    %1246 = vmatpush.msra.mxu0 %v1053
    %1247 = vmatpush.msra.mxu0 %v1051
    %1248 = vmatpush.msra.mxu0 %v1049
    %1249 = vmatmul.f32.gmra.mxu0 %v951
    %v1250 = vpop.f32.mrf.mxu0
    %v1251 = vadd.f32 %v1210, %v1250
    %1252 = vmatmul.f32.gmra.mxu0 %v952
    %v1253 = vpop.f32.mrf.mxu0
    %v1254 = vadd.f32 %v1213, %v1253
    %1255 = vmatmul.f32.gmra.mxu0 %v953
    %v1256 = vpop.f32.mrf.mxu0
    %v1257 = vadd.f32 %v1216, %v1256
    %1258 = vmatmul.f32.gmra.mxu0 %v954
    %v1259 = vpop.f32.mrf.mxu0
    %v1260 = vadd.f32 %v1219, %v1259
    %1261 = vmatmul.f32.gmra.mxu0 %v955
    %v1262 = vpop.f32.mrf.mxu0
    %v1263 = vadd.f32 %v1222, %v1262
    %1264 = vmatmul.f32.gmra.mxu0 %v956
    %v1265 = vpop.f32.mrf.mxu0
    %v1266 = vadd.f32 %v1225, %v1265
    %1267 = vmatmul.f32.gmra.mxu0 %v957
    %v1268 = vpop.f32.mrf.mxu0
    %v1269 = vadd.f32 %v1228, %v1268
    %1270 = vmatmul.f32.gmra.mxu0 %v958
    %v1271 = vpop.f32.mrf.mxu0
    %v1272 = vadd.f32 %v1231, %v1271
    %1273 = vdwg.mxu0
    %1274 = vmatpush.msra.mxu0 %v1111
    %1275 = vmatpush.msra.mxu0 %v1109
    %1276 = vmatpush.msra.mxu0 %v1107
    %1277 = vmatpush.msra.mxu0 %v1105
    %1278 = vmatpush.msra.mxu0 %v1103
    %1279 = vmatpush.msra.mxu0 %v1101
    %1280 = vmatpush.msra.mxu0 %v1099
    %1281 = vmatpush.msra.mxu0 %v1097
    %1282 = vmatpush.msra.mxu0 %v1095
    %1283 = vmatpush.msra.mxu0 %v1093
    %1284 = vmatpush.msra.mxu0 %v1091
    %1285 = vmatpush.msra.mxu0 %v1089
    %1286 = vmatpush.msra.mxu0 %v1087
    %1287 = vmatpush.msra.mxu0 %v1085
    %1288 = vmatpush.msra.mxu0 %v1083
    %1289 = vmatpush.msra.mxu0 %v1081
    %1290 = vmatmul.f32.gmra.mxu0 %v977
    %v1291 = vpop.f32.mrf.mxu0
    %v1292 = vadd.f32 %v1251, %v1291
    %1293 = vmatmul.f32.gmra.mxu0 %v978
    %v1294 = vpop.f32.mrf.mxu0
    %v1295 = vadd.f32 %v1254, %v1294
    %1296 = vmatmul.f32.gmra.mxu0 %v979
    %v1297 = vpop.f32.mrf.mxu0
    %v1298 = vadd.f32 %v1257, %v1297
    %1299 = vmatmul.f32.gmra.mxu0 %v980
    %v1300 = vpop.f32.mrf.mxu0
    %v1301 = vadd.f32 %v1260, %v1300
    %1302 = vmatmul.f32.gmra.mxu0 %v981
    %v1303 = vpop.f32.mrf.mxu0
    %v1304 = vadd.f32 %v1263, %v1303
    %1305 = vmatmul.f32.gmra.mxu0 %v982
    %v1306 = vpop.f32.mrf.mxu0
    %v1307 = vadd.f32 %v1266, %v1306
    %1308 = vmatmul.f32.gmra.mxu0 %v983
    %v1309 = vpop.f32.mrf.mxu0
    %v1310 = vadd.f32 %v1269, %v1309
    %1311 = vmatmul.f32.gmra.mxu0 %v984
    %v1312 = vpop.f32.mrf.mxu0
    %v1313 = vadd.f32 %v1272, %v1312
    %1314 = vdwg.mxu0
    %1315 = vmatpush.msra.mxu0 %v1143
    %1316 = vmatpush.msra.mxu0 %v1141
    %1317 = vmatpush.msra.mxu0 %v1139
    %1318 = vmatpush.msra.mxu0 %v1137
    %1319 = vmatpush.msra.mxu0 %v1135
    %1320 = vmatpush.msra.mxu0 %v1133
    %1321 = vmatpush.msra.mxu0 %v1131
    %1322 = vmatpush.msra.mxu0 %v1129
    %1323 = vmatpush.msra.mxu0 %v1127
    %1324 = vmatpush.msra.mxu0 %v1125
    %1325 = vmatpush.msra.mxu0 %v1123
    %1326 = vmatpush.msra.mxu0 %v1121
    %1327 = vmatpush.msra.mxu0 %v1119
    %1328 = vmatpush.msra.mxu0 %v1117
    %1329 = vmatpush.msra.mxu0 %v1115
    %1330 = vmatpush.msra.mxu0 %v1113
    %1331 = vmatmul.f32.gmra.mxu0 %v312
    %v1332 = vpop.f32.mrf.mxu0
    %v1333 = vadd.f32 %v1292, %v1332
    %1334 = vmatmul.f32.gmra.mxu0 %v313
    %v1335 = vpop.f32.mrf.mxu0
    %v1336 = vadd.f32 %v1295, %v1335
    %1337 = vmatmul.f32.gmra.mxu0 %v314
    %v1338 = vpop.f32.mrf.mxu0
    %v1339 = vadd.f32 %v1298, %v1338
    %1340 = vmatmul.f32.gmra.mxu0 %v315
    %v1341 = vpop.f32.mrf.mxu0
    %v1342 = vadd.f32 %v1301, %v1341
    %1343 = vmatmul.f32.gmra.mxu0 %v316
    %v1344 = vpop.f32.mrf.mxu0
    %v1345 = vadd.f32 %v1304, %v1344
    %1346 = vmatmul.f32.gmra.mxu0 %v317
    %v1347 = vpop.f32.mrf.mxu0
    %v1348 = vadd.f32 %v1307, %v1347
    %1349 = vmatmul.f32.gmra.mxu0 %v318
    %v1350 = vpop.f32.mrf.mxu0
    %v1351 = vadd.f32 %v1310, %v1350
    %1352 = vmatmul.f32.gmra.mxu0 %v319
    %v1353 = vpop.f32.mrf.mxu0
    %v1354 = vadd.f32 %v1313, %v1353
    %1355 = vdwg.mxu0
    %1356 = vmatpush.msra.mxu0 %v1016
    %1357 = vmatpush.msra.mxu0 %v1014
    %1358 = vmatpush.msra.mxu0 %v1012
    %1359 = vmatpush.msra.mxu0 %v1010
    %1360 = vmatpush.msra.mxu0 %v1008
    %1361 = vmatpush.msra.mxu0 %v1006
    %1362 = vmatpush.msra.mxu0 %v1004
    %1363 = vmatpush.msra.mxu0 %v1002
    %1364 = vmatpush.msra.mxu0 %v1000
    %1365 = vmatpush.msra.mxu0 %v998
    %1366 = vmatpush.msra.mxu0 %v996
    %1367 = vmatpush.msra.mxu0 %v994
    %1368 = vmatpush.msra.mxu0 %v992
    %1369 = vmatpush.msra.mxu0 %v990
    %1370 = vmatpush.msra.mxu0 %v988
    %1371 = vmatpush.msra.mxu0 %v986
    %1372 = vmatmul.f32.gmra.mxu0 %v899
    %v1373 = vpop.f32.mrf.mxu0
    %v1374 = vadd.f32 %v1148, %v1373
    %1375 = vmatmul.f32.gmra.mxu0 %v900
    %v1376 = vpop.f32.mrf.mxu0
    %v1377 = vadd.f32 %v1148, %v1376
    %1378 = vmatmul.f32.gmra.mxu0 %v901
    %v1379 = vpop.f32.mrf.mxu0
    %v1380 = vadd.f32 %v1148, %v1379
    %1381 = vmatmul.f32.gmra.mxu0 %v902
    %v1382 = vpop.f32.mrf.mxu0
    %v1383 = vadd.f32 %v1148, %v1382
    %1384 = vmatmul.f32.gmra.mxu0 %v903
    %v1385 = vpop.f32.mrf.mxu0
    %v1386 = vadd.f32 %v1148, %v1385
    %1387 = vmatmul.f32.gmra.mxu0 %v904
    %v1388 = vpop.f32.mrf.mxu0
    %v1389 = vadd.f32 %v1148, %v1388
    %1390 = vmatmul.f32.gmra.mxu0 %v905
    %v1391 = vpop.f32.mrf.mxu0
    %v1392 = vadd.f32 %v1148, %v1391
    %1393 = vmatmul.f32.gmra.mxu0 %v906
    %v1394 = vpop.f32.mrf.mxu0
    %v1395 = vadd.f32 %v1148, %v1394
    %1396 = vdwg.mxu0
    %1397 = vmatpush.msra.mxu0 %v1048
    %1398 = vmatpush.msra.mxu0 %v1046
    %1399 = vmatpush.msra.mxu0 %v1044
    %1400 = vmatpush.msra.mxu0 %v1042
    %1401 = vmatpush.msra.mxu0 %v1040
    %1402 = vmatpush.msra.mxu0 %v1038
    %1403 = vmatpush.msra.mxu0 %v1036
    %1404 = vmatpush.msra.mxu0 %v1034
    %1405 = vmatpush.msra.mxu0 %v1032
    %1406 = vmatpush.msra.mxu0 %v1030
    %1407 = vmatpush.msra.mxu0 %v1028
    %1408 = vmatpush.msra.mxu0 %v1026
    %1409 = vmatpush.msra.mxu0 %v1024
    %1410 = vmatpush.msra.mxu0 %v1022
    %1411 = vmatpush.msra.mxu0 %v1020
    %1412 = vmatpush.msra.mxu0 %v1018
    %1413 = vmatmul.f32.gmra.mxu0 %v925
    %v1414 = vpop.f32.mrf.mxu0
    %v1415 = vadd.f32 %v1374, %v1414
    %1416 = vmatmul.f32.gmra.mxu0 %v926
    %v1417 = vpop.f32.mrf.mxu0
    %v1418 = vadd.f32 %v1377, %v1417
    %1419 = vmatmul.f32.gmra.mxu0 %v927
    %v1420 = vpop.f32.mrf.mxu0
    %v1421 = vadd.f32 %v1380, %v1420
    %1422 = vmatmul.f32.gmra.mxu0 %v928
    %v1423 = vpop.f32.mrf.mxu0
    %v1424 = vadd.f32 %v1383, %v1423
    %1425 = vmatmul.f32.gmra.mxu0 %v929
    %v1426 = vpop.f32.mrf.mxu0
    %v1427 = vadd.f32 %v1386, %v1426
    %1428 = vmatmul.f32.gmra.mxu0 %v930
    %v1429 = vpop.f32.mrf.mxu0
    %v1430 = vadd.f32 %v1389, %v1429
    %1431 = vmatmul.f32.gmra.mxu0 %v931
    %v1432 = vpop.f32.mrf.mxu0
    %v1433 = vadd.f32 %v1392, %v1432
    %1434 = vmatmul.f32.gmra.mxu0 %v932
    %v1435 = vpop.f32.mrf.mxu0
    %v1436 = vadd.f32 %v1395, %v1435
    %1437 = vdwg.mxu0
    %1438 = vmatpush.msra.mxu0 %v1080
    %1439 = vmatpush.msra.mxu0 %v1078
    %1440 = vmatpush.msra.mxu0 %v1076
    %1441 = vmatpush.msra.mxu0 %v1074
    %1442 = vmatpush.msra.mxu0 %v1072
    %1443 = vmatpush.msra.mxu0 %v1070
    %1444 = vmatpush.msra.mxu0 %v1068
    %1445 = vmatpush.msra.mxu0 %v1066
    %1446 = vmatpush.msra.mxu0 %v1064
    %1447 = vmatpush.msra.mxu0 %v1062
    %1448 = vmatpush.msra.mxu0 %v1060
    %1449 = vmatpush.msra.mxu0 %v1058
    %1450 = vmatpush.msra.mxu0 %v1056
    %1451 = vmatpush.msra.mxu0 %v1054
    %1452 = vmatpush.msra.mxu0 %v1052
    %1453 = vmatpush.msra.mxu0 %v1050
    %1454 = vmatmul.f32.gmra.mxu0 %v951
    %v1455 = vpop.f32.mrf.mxu0
    %v1456 = vadd.f32 %v1415, %v1455
    %1457 = vmatmul.f32.gmra.mxu0 %v952
    %v1458 = vpop.f32.mrf.mxu0
    %v1459 = vadd.f32 %v1418, %v1458
    %1460 = vmatmul.f32.gmra.mxu0 %v953
    %v1461 = vpop.f32.mrf.mxu0
    %v1462 = vadd.f32 %v1421, %v1461
    %1463 = vmatmul.f32.gmra.mxu0 %v954
    %v1464 = vpop.f32.mrf.mxu0
    %v1465 = vadd.f32 %v1424, %v1464
    %1466 = vmatmul.f32.gmra.mxu0 %v955
    %v1467 = vpop.f32.mrf.mxu0
    %v1468 = vadd.f32 %v1427, %v1467
    %1469 = vmatmul.f32.gmra.mxu0 %v956
    %v1470 = vpop.f32.mrf.mxu0
    %v1471 = vadd.f32 %v1430, %v1470
    %1472 = vmatmul.f32.gmra.mxu0 %v957
    %v1473 = vpop.f32.mrf.mxu0
    %v1474 = vadd.f32 %v1433, %v1473
    %1475 = vmatmul.f32.gmra.mxu0 %v958
    %v1476 = vpop.f32.mrf.mxu0
    %v1477 = vadd.f32 %v1436, %v1476
    %1478 = vdwg.mxu0
    %1479 = vmatpush.msra.mxu0 %v1112
    %1480 = vmatpush.msra.mxu0 %v1110
    %1481 = vmatpush.msra.mxu0 %v1108
    %1482 = vmatpush.msra.mxu0 %v1106
    %1483 = vmatpush.msra.mxu0 %v1104
    %1484 = vmatpush.msra.mxu0 %v1102
    %1485 = vmatpush.msra.mxu0 %v1100
    %1486 = vmatpush.msra.mxu0 %v1098
    %1487 = vmatpush.msra.mxu0 %v1096
    %1488 = vmatpush.msra.mxu0 %v1094
    %1489 = vmatpush.msra.mxu0 %v1092
    %1490 = vmatpush.msra.mxu0 %v1090
    %1491 = vmatpush.msra.mxu0 %v1088
    %1492 = vmatpush.msra.mxu0 %v1086
    %1493 = vmatpush.msra.mxu0 %v1084
    %1494 = vmatpush.msra.mxu0 %v1082
    %1495 = vmatmul.f32.gmra.mxu0 %v977
    %v1496 = vpop.f32.mrf.mxu0
    %v1497 = vadd.f32 %v1456, %v1496
    %1498 = vmatmul.f32.gmra.mxu0 %v978
    %v1499 = vpop.f32.mrf.mxu0
    %v1500 = vadd.f32 %v1459, %v1499
    %1501 = vmatmul.f32.gmra.mxu0 %v979
    %v1502 = vpop.f32.mrf.mxu0
    %v1503 = vadd.f32 %v1462, %v1502
    %1504 = vmatmul.f32.gmra.mxu0 %v980
    %v1505 = vpop.f32.mrf.mxu0
    %v1506 = vadd.f32 %v1465, %v1505
    %1507 = vmatmul.f32.gmra.mxu0 %v981
    %v1508 = vpop.f32.mrf.mxu0
    %v1509 = vadd.f32 %v1468, %v1508
    %1510 = vmatmul.f32.gmra.mxu0 %v982
    %v1511 = vpop.f32.mrf.mxu0
    %v1512 = vadd.f32 %v1471, %v1511
    %1513 = vmatmul.f32.gmra.mxu0 %v983
    %v1514 = vpop.f32.mrf.mxu0
    %v1515 = vadd.f32 %v1474, %v1514
    %1516 = vmatmul.f32.gmra.mxu0 %v984
    %v1517 = vpop.f32.mrf.mxu0
    %v1518 = vadd.f32 %v1477, %v1517
    %1519 = vdwg.mxu0
    %1520 = vmatpush.msra.mxu0 %v1144
    %1521 = vmatpush.msra.mxu0 %v1142
    %1522 = vmatpush.msra.mxu0 %v1140
    %1523 = vmatpush.msra.mxu0 %v1138
    %1524 = vmatpush.msra.mxu0 %v1136
    %1525 = vmatpush.msra.mxu0 %v1134
    %1526 = vmatpush.msra.mxu0 %v1132
    %1527 = vmatpush.msra.mxu0 %v1130
    %1528 = vmatpush.msra.mxu0 %v1128
    %1529 = vmatpush.msra.mxu0 %v1126
    %1530 = vmatpush.msra.mxu0 %v1124
    %1531 = vmatpush.msra.mxu0 %v1122
    %1532 = vmatpush.msra.mxu0 %v1120
    %1533 = vmatpush.msra.mxu0 %v1118
    %1534 = vmatpush.msra.mxu0 %v1116
    %1535 = vmatpush.msra.mxu0 %v1114
    %1536 = vmatmul.f32.gmra.mxu0 %v312
    %v1537 = vpop.f32.mrf.mxu0
    %v1538 = vadd.f32 %v1497, %v1537
    %1539 = vmatmul.f32.gmra.mxu0 %v313
    %v1540 = vpop.f32.mrf.mxu0
    %v1541 = vadd.f32 %v1500, %v1540
    %1542 = vmatmul.f32.gmra.mxu0 %v314
    %v1543 = vpop.f32.mrf.mxu0
    %v1544 = vadd.f32 %v1503, %v1543
    %1545 = vmatmul.f32.gmra.mxu0 %v315
    %v1546 = vpop.f32.mrf.mxu0
    %v1547 = vadd.f32 %v1506, %v1546
    %1548 = vmatmul.f32.gmra.mxu0 %v316
    %v1549 = vpop.f32.mrf.mxu0
    %v1550 = vadd.f32 %v1509, %v1549
    %1551 = vmatmul.f32.gmra.mxu0 %v317
    %v1552 = vpop.f32.mrf.mxu0
    %v1553 = vadd.f32 %v1512, %v1552
    %1554 = vmatmul.f32.gmra.mxu0 %v318
    %v1555 = vpop.f32.mrf.mxu0
    %v1556 = vadd.f32 %v1515, %v1555
    %1557 = vmatmul.f32.gmra.mxu0 %v319
    %v1558 = vpop.f32.mrf.mxu0
    %v1559 = vadd.f32 %v1518, %v1558
    %1560 = vdwg.mxu0
    %v1561 = vmax.f32 %v1333, 0.0
    %v1562 = vmax.f32 %v1538, 0.0
    %v1563 = vmax.f32 %v1336, 0.0
    %v1564 = vmax.f32 %v1541, 0.0
    %v1565 = vmax.f32 %v1339, 0.0
    %v1566 = vmax.f32 %v1544, 0.0
    %v1567 = vmax.f32 %v1342, 0.0
    %v1568 = vmax.f32 %v1547, 0.0
    %v1569 = vmax.f32 %v1345, 0.0
    %v1570 = vmax.f32 %v1550, 0.0
    %v1571 = vmax.f32 %v1348, 0.0
    %v1572 = vmax.f32 %v1553, 0.0
    %v1573 = vmax.f32 %v1351, 0.0
    %v1574 = vmax.f32 %v1556, 0.0
    %v1575 = vmax.f32 %v1354, 0.0
    %v1576 = vmax.f32 %v1559, 0.0
    %v1577 = vld [vmem:[#allocation11] sm:$0xff]
    %v1578 = vld [vmem:[#allocation11 + $0x8] sm:$0xff]
    %v1579 = vld [vmem:[#allocation11 + $0x10] sm:$0xff]
    %v1580 = vld [vmem:[#allocation11 + $0x18] sm:$0xff]
    %v1581 = vld [vmem:[#allocation11 + $0x20] sm:$0xff]
    %v1582 = vld [vmem:[#allocation11 + $0x28] sm:$0xff]
    %v1583 = vld [vmem:[#allocation11 + $0x30] sm:$0xff]
    %v1584 = vld [vmem:[#allocation11 + $0x38] sm:$0xff]
    %v1585 = vld [vmem:[#allocation11 + $0x40] sm:$0xff]
    %v1586 = vld [vmem:[#allocation11 + $0x48] sm:$0xff]
    %v1587 = vld [vmem:[#allocation11 + $0x50] sm:$0xff]
    %v1588 = vld [vmem:[#allocation11 + $0x58] sm:$0xff]
    %v1589 = vld [vmem:[#allocation11 + $0x60] sm:$0xff]
    %v1590 = vld [vmem:[#allocation11 + $0x68] sm:$0xff]
    %v1591 = vld [vmem:[#allocation11 + $0x70] sm:$0xff]
    %v1592 = vld [vmem:[#allocation11 + $0x78] sm:$0xff]
    %v1593 = vld [vmem:[#allocation11 + $0x80] sm:$0xff]
    %v1594 = vld [vmem:[#allocation11 + $0x88] sm:$0xff]
    %v1595 = vld [vmem:[#allocation11 + $0x90] sm:$0xff]
    %v1596 = vld [vmem:[#allocation11 + $0x98] sm:$0xff]
    %v1597 = vld [vmem:[#allocation11 + $0xa0] sm:$0xff]
    %v1598 = vld [vmem:[#allocation11 + $0xa8] sm:$0xff]
    %v1599 = vld [vmem:[#allocation11 + $0xb0] sm:$0xff]
    %v1600 = vld [vmem:[#allocation11 + $0xb8] sm:$0xff]
    %v1601 = vld [vmem:[#allocation11 + $0xc0] sm:$0xff]
    %v1602 = vld [vmem:[#allocation11 + $0xc8] sm:$0xff]
    %v1603 = vld [vmem:[#allocation11 + $0xd0] sm:$0xff]
    %v1604 = vld [vmem:[#allocation11 + $0xd8] sm:$0xff]
    %v1605 = vld [vmem:[#allocation11 + $0xe0] sm:$0xff]
    %v1606 = vld [vmem:[#allocation11 + $0xe8] sm:$0xff]
    %v1607 = vld [vmem:[#allocation11 + $0xf0] sm:$0xff]
    %v1608 = vld [vmem:[#allocation11 + $0xf8] sm:$0xff]
    %v1609 = vld [vmem:[%s8] sm:$0x1]
    %v1611 = vperm.slane %v1609, 0
    %1613 = vmatpush.msra.mxu0 %v1592
    %1614 = vmatpush.msra.mxu0 %v1591
    %1615 = vmatpush.msra.mxu0 %v1590
    %1616 = vmatpush.msra.mxu0 %v1589
    %1617 = vmatpush.msra.mxu0 %v1588
    %1618 = vmatpush.msra.mxu0 %v1587
    %1619 = vmatpush.msra.mxu0 %v1586
    %1620 = vmatpush.msra.mxu0 %v1585
    %1621 = vmatpush.msra.mxu0 %v1584
    %1622 = vmatpush.msra.mxu0 %v1583
    %1623 = vmatpush.msra.mxu0 %v1582
    %1624 = vmatpush.msra.mxu0 %v1581
    %1625 = vmatpush.msra.mxu0 %v1580
    %1626 = vmatpush.msra.mxu0 %v1579
    %1627 = vmatpush.msra.mxu0 %v1578
    %1628 = vmatpush.msra.mxu0 %v1577
    %1629 = vmatmul.f32.gmra.mxu0 %v1561
    %v1630 = vpop.f32.mrf.mxu0
    %v1631 = vadd.f32 %v1611, %v1630
    %1632 = vmatmul.f32.gmra.mxu0 %v1563
    %v1633 = vpop.f32.mrf.mxu0
    %v1634 = vadd.f32 %v1611, %v1633
    %1635 = vmatmul.f32.gmra.mxu0 %v1565
    %v1636 = vpop.f32.mrf.mxu0
    %v1637 = vadd.f32 %v1611, %v1636
    %1638 = vmatmul.f32.gmra.mxu0 %v1567
    %v1639 = vpop.f32.mrf.mxu0
    %v1640 = vadd.f32 %v1611, %v1639
    %1641 = vmatmul.f32.gmra.mxu0 %v1569
    %v1642 = vpop.f32.mrf.mxu0
    %v1643 = vadd.f32 %v1611, %v1642
    %1644 = vmatmul.f32.gmra.mxu0 %v1571
    %v1645 = vpop.f32.mrf.mxu0
    %v1646 = vadd.f32 %v1611, %v1645
    %1647 = vmatmul.f32.gmra.mxu0 %v1573
    %v1648 = vpop.f32.mrf.mxu0
    %v1649 = vadd.f32 %v1611, %v1648
    %1650 = vmatmul.f32.gmra.mxu0 %v1575
    %v1651 = vpop.f32.mrf.mxu0
    %v1652 = vadd.f32 %v1611, %v1651
    %1653 = vdwg.mxu0
    %1654 = vmatpush.msra.mxu0 %v1608
    %1655 = vmatpush.msra.mxu0 %v1607
    %1656 = vmatpush.msra.mxu0 %v1606
    %1657 = vmatpush.msra.mxu0 %v1605
    %1658 = vmatpush.msra.mxu0 %v1604
    %1659 = vmatpush.msra.mxu0 %v1603
    %1660 = vmatpush.msra.mxu0 %v1602
    %1661 = vmatpush.msra.mxu0 %v1601
    %1662 = vmatpush.msra.mxu0 %v1600
    %1663 = vmatpush.msra.mxu0 %v1599
    %1664 = vmatpush.msra.mxu0 %v1598
    %1665 = vmatpush.msra.mxu0 %v1597
    %1666 = vmatpush.msra.mxu0 %v1596
    %1667 = vmatpush.msra.mxu0 %v1595
    %1668 = vmatpush.msra.mxu0 %v1594
    %1669 = vmatpush.msra.mxu0 %v1593
    %1670 = vmatmul.f32.gmra.mxu0 %v1562
    %v1671 = vpop.f32.mrf.mxu0
    %v1672 = vadd.f32 %v1631, %v1671
    %1673 = vmatmul.f32.gmra.mxu0 %v1564
    %v1674 = vpop.f32.mrf.mxu0
    %v1675 = vadd.f32 %v1634, %v1674
    %1676 = vmatmul.f32.gmra.mxu0 %v1566
    %v1677 = vpop.f32.mrf.mxu0
    %v1678 = vadd.f32 %v1637, %v1677
    %1679 = vmatmul.f32.gmra.mxu0 %v1568
    %v1680 = vpop.f32.mrf.mxu0
    %v1681 = vadd.f32 %v1640, %v1680
    %1682 = vmatmul.f32.gmra.mxu0 %v1570
    %v1683 = vpop.f32.mrf.mxu0
    %v1684 = vadd.f32 %v1643, %v1683
    %1685 = vmatmul.f32.gmra.mxu0 %v1572
    %v1686 = vpop.f32.mrf.mxu0
    %v1687 = vadd.f32 %v1646, %v1686
    %1688 = vmatmul.f32.gmra.mxu0 %v1574
    %v1689 = vpop.f32.mrf.mxu0
    %v1690 = vadd.f32 %v1649, %v1689
    %1691 = vmatmul.f32.gmra.mxu0 %v1576
    %v1692 = vpop.f32.mrf.mxu0
    %v1693 = vadd.f32 %v1652, %v1692
    %1694 = vdwg.mxu0
    %v1695 = vadd.f32 %v1672, %v121
    %v1696 = vadd.f32 %v1675, %v122
    %v1697 = vadd.f32 %v1678, %v123
    %v1698 = vadd.f32 %v1681, %v124
    %v1699 = vadd.f32 %v1684, %v125
    %v1700 = vadd.f32 %v1687, %v126
    %v1701 = vadd.f32 %v1690, %v127
    %v1702 = vadd.f32 %v1693, %v128
    %1703 = vst [vmem:[#allocation13] sm:$0xff] %v1695
    %1704 = vst [vmem:[#allocation13 + $0x8] sm:$0xff] %v1696
    %1705 = vst [vmem:[#allocation13 + $0x10] sm:$0xff] %v1697
    %1706 = vst [vmem:[#allocation13 + $0x18] sm:$0xff] %v1698
    %1707 = vst [vmem:[#allocation13 + $0x20] sm:$0xff] %v1699
    %1708 = vst [vmem:[#allocation13 + $0x28] sm:$0xff] %v1700
    %1709 = vst [vmem:[#allocation13 + $0x30] sm:$0xff] %v1701
    %1710 = vst [vmem:[#allocation13 + $0x38] sm:$0xff] %v1702
    // Predicated region
    $region62: #{tpu_custom_call.1} parent=1 // pred_check
      _
    $region63: #{tpu_custom_call.1} parent=1 // pred_check_branch
      %1712 = sbr.rel (0) target = $region65
    $region64: #{tpu_custom_call.1} parent=1 // pred_region
      %1714 = vsyncadd [#allocation4], 0
      %s1715 = sshll.u32 [#allocation13], 4
      %s1716 = int_to_ptr.vmem [resolvable:$true] %s1715
      %s1717 = sshll.u32 %s9, 4
      %s1718 = int_to_ptr.hbm [resolvable:$true] %s1717
      %1723 = dma.vmem_to_hbm [thread:$0]  %s1716, 1024, %s1718, [#allocation4], 128, 128, 8
    $region65: #{tpu_custom_call.1} parent=1 // pred_fallthru
      _
    // Predicated region
    $region66: #{tpu_custom_call.1} parent=1 // pred_check
      _
    $region67: #{tpu_custom_call.1} parent=1 // pred_check_branch
      %1725 = sbr.rel (0) target = $region69
    $region68: #{tpu_custom_call.1} parent=1 // pred_region
      %1727 = dma.done [#allocation4], 1024
    $region69: #{tpu_custom_call.1} parent=1 // pred_fallthru
      _
    %1728 = vsyncpa [#allocation3], 1
    %1729 = vsyncpa [#allocation6], 1
    %1730 = vsyncpa [#allocation9], 1
    %1731 = vsyncpa [#allocation12], 1
    %1732 = vsyncpa [#allocation4], 1

</llo_original>
